<compile_context>
chip_gen: v6e
topology: v6e:2x2x1
jax: 0.10.0
libtpu: 0.0.40
codegen_flags: <defaults>
</compile_context>

<pallas_src>
import jax
import jax.numpy as jnp
from jax.experimental import pallas as pl
from jax.experimental.pallas import tpu as pltpu  # noqa: F401 (TPU backend kept explicit)

# ----- hyper-parameters implied by the module ------------------------------
INPUT_SIZE = 16      # D: feature dim = GLN side-info dim Z
OUTPUT_SIZE = 4      # C: n_classes (one binary GLN per class)
HIDDEN_SIZE = 32     # H: SRNN cell hidden size
NUM_LAYERS = 2       # GLN depth
HYPER_SIZE = 8
HALF_SPACES = 2      # hard-coded in Online_SRNN_GLN_Cell
EPS = 0.001          # hard-coded eps in Online_SRNN_GLN_Cell
SEQ_LEN = 8          # N: GLN batch = sequence positions (outer batch must be 1)

K0 = NUM_LAYERS * HYPER_SIZE   # outputs of GLN layer 0 (per class)
NGATE = 2 ** HALF_SPACES       # gated weight vectors per neuron
CK = OUTPUT_SIZE * K0          # fused layer-0 width (classes x neurons) = 64


# ---------------------------------------------------------------------------
# Fused Pallas kernel: MultiClassGLN (both layers, all classes) + SRNN cell
# ---------------------------------------------------------------------------
def fused_kernel(x_ref, gw0_ref, gb0_ref, ww0_ref, wb0_ref,
                 gw1_ref, gb1_ref, ww1_ref, wb1_ref,
                 fhw_ref, fhb_ref, f2w_ref, f2b_ref, perm_ref,
                 out_ref, hid_ref):
    C = OUTPUT_SIZE
    z = x_ref[...]                                    # [N, D] side information
    logit_bias = jnp.log((1.0 - EPS) / EPS)           # logit of the (1-eps) bias term

    # ---------------- GLN layer 0 (all classes fused along lanes) ----------
    # lanes of gv0 are laid out [halfspace, class, neuron]
    # lanes of y0  are laid out [gate,      class, neuron]
    x0 = jnp.clip(z, EPS, 1.0 - EPS)                  # GLN.base_predictions (shared)
    lx0 = jnp.log(x0 / (1.0 - x0))
    y0 = jnp.dot(lx0, ww0_ref[...], preferred_element_type=jnp.float32) \
        + logit_bias * wb0_ref[...]                   # [N, NGATE*CK] = [8, 256]
    gv0 = jnp.dot(z, gw0_ref[...], preferred_element_type=jnp.float32) \
        + gb0_ref[...]                                # [N, HS*CK]   = [8, 128]

    choice0 = jnp.zeros((SEQ_LEN, CK), dtype=jnp.int32)
    for i in range(HALF_SPACES):
        bit = (gv0[:, i * CK:(i + 1) * CK] > 0).astype(jnp.int32)
        choice0 = choice0 + bit * (2 ** i)
    sel0 = jnp.zeros((SEQ_LEN, CK), dtype=jnp.float32)
    for g in range(NGATE):
        sel0 = sel0 + jnp.where(choice0 == g, y0[:, g * CK:(g + 1) * CK], 0.0)
    p1 = jnp.clip(jax.nn.sigmoid(sel0), EPS, 1.0 - EPS)   # [N, C*K0], lanes [class, neuron]

    # ---------------- GLN layer 1 (block-diagonal weight, all classes) -----
    # lanes of y1/gv1 are laid out [gate, class] / [halfspace, class]
    lp1 = jnp.log(p1 / (1.0 - p1))
    y1 = jnp.dot(lp1, ww1_ref[...], preferred_element_type=jnp.float32) \
        + logit_bias * wb1_ref[...]                   # [N, NGATE*C] = [8, 16]
    gv1 = jnp.dot(z, gw1_ref[...], preferred_element_type=jnp.float32) \
        + gb1_ref[...]                                # [N, HS*C]    = [8, 8]

    choice1 = jnp.zeros((SEQ_LEN, C), dtype=jnp.int32)
    for i in range(HALF_SPACES):
        bit = (gv1[:, i * C:(i + 1) * C] > 0).astype(jnp.int32)
        choice1 = choice1 + bit * (2 ** i)
    sel1 = jnp.zeros((SEQ_LEN, C), dtype=jnp.float32)
    for g in range(NGATE):
        sel1 = sel1 + jnp.where(choice1 == g, y1[:, g * C:(g + 1) * C], 0.0)
    gln_probs = jnp.clip(jax.nn.sigmoid(sel1), EPS, 1.0 - EPS)   # [N, C]

    # ---------------- SRNN cell (fc_h, sigmoid-alpha fc2, recurrence) ------
    b = jnp.dot(gln_probs, fhw_ref[...], preferred_element_type=jnp.float32) + fhb_ref[...]
    alphas = jax.nn.sigmoid(
        jnp.dot(z, f2w_ref[...], preferred_element_type=jnp.float32) + f2b_ref[...])
    b = b * alphas                                    # [N, H]

    # torch.roll(prev, 1, -1) == prev @ perm (perm precomputed on host).
    perm = perm_ref[...]                              # [H, H]
    prev = jnp.maximum(b[0:1, :], 0.0)                # hidden is None -> no initial roll
    out_ref[0:1, :] = prev
    for i in range(1, SEQ_LEN):                       # fully unrolled, prev stays in vregs
        rolled = jnp.dot(prev, perm, preferred_element_type=jnp.float32)
        prev = jnp.maximum(b[i:i + 1, :] + rolled, 0.0)
        out_ref[i:i + 1, :] = prev
    hid_ref[...] = prev


# ---------------------------------------------------------------------------
# One-time parameter packing (hoisted out of the forward path)
# ---------------------------------------------------------------------------
def pack_params(p):
    C, D, H, K = OUTPUT_SIZE, INPUT_SIZE, HIDDEN_SIZE, K0
    HS = HALF_SPACES

    # Layer 0: stack classes along lanes, layout [halfspace|gate, class, neuron]
    gw0 = p["gw0"].reshape(C, HS, K, D).transpose(1, 0, 2, 3).reshape(HS * C * K, D).T
    gb0 = p["gb0"].reshape(C, HS, K).transpose(1, 0, 2).reshape(1, HS * C * K)
    ww0 = p["ww0"][:, :, :D].reshape(C, NGATE, K, D).transpose(1, 0, 2, 3).reshape(NGATE * C * K, D).T
    wb0 = p["ww0"][:, :, D].reshape(C, NGATE, K).transpose(1, 0, 2).reshape(1, NGATE * C * K)

    # Layer 1 gates: layout [halfspace, class]
    gw1 = p["gw1"].reshape(C, HS, D).transpose(1, 0, 2).reshape(HS * C, D).T
    gb1 = p["gb1"].reshape(C, HS).T.reshape(1, HS * C)

    # Layer 1 weights: block-diagonal [C*K0, NGATE*C]; rows [class, neuron],
    # cols [gate, class]; W[c*K0+j, g*C+c] = ww1[c, g, j]
    ww1_blk = jnp.zeros((C * K, NGATE * C), jnp.float32)
    for c in range(C):
        blk = p["ww1"][c, :, :K].T                    # [K0, NGATE]
        ww1_blk = ww1_blk.at[c * K:(c + 1) * K, c::C].set(blk)
    wb1 = p["ww1"][:, :, K].T.reshape(1, NGATE * C)

    # SRNN fc weights (transposed once) + roll-by-1 permutation matrix.
    perm = jnp.roll(jnp.eye(H, dtype=jnp.float32), 1, axis=1)   # (v @ perm)[j] = v[j-1]
    return dict(gw0=gw0, gb0=gb0, ww0=ww0, wb0=wb0,
                gw1=gw1, gb1=gb1, ww1=ww1_blk, wb1=wb1,
                fhw=p["fhw"].T, fhb=p["fhb"][None, :],
                f2w=p["f2w"].T, f2b=p["f2b"][None, :], perm=perm)


# ---------------------------------------------------------------------------
# Forward wrapper: one pallas_call, no grid, whole arrays resident in VMEM
# ---------------------------------------------------------------------------
@jax.jit
def online_srnn_gln_forward(x, packed):
    """x: [1, SEQ_LEN, INPUT_SIZE] (online model: batch must be 1).

    Mirrors Online_SRNN_GLN.forward(x) with hidden=None, targets=None,
    single_output=False. Returns (outputs [1, N, H], hidden [1, H]).
    """
    x2 = x[0]                                         # cell squeezes the batch dim
    outs, hidden = pl.pallas_call(
        fused_kernel,
        out_shape=(jax.ShapeDtypeStruct((SEQ_LEN, HIDDEN_SIZE), jnp.float32),
                   jax.ShapeDtypeStruct((1, HIDDEN_SIZE), jnp.float32)),
    )(x2,
      packed["gw0"], packed["gb0"], packed["ww0"], packed["wb0"],
      packed["gw1"], packed["gb1"], packed["ww1"], packed["wb1"],
      packed["fhw"], packed["fhb"], packed["f2w"], packed["f2b"], packed["perm"])
    return outs[None], hidden


# ---------------------------------------------------------------------------
# Pure-JAX reference (for verification only)
# ---------------------------------------------------------------------------
def _gln_layer_ref(x, z, gw, gb, ww, num_out):
    n = x.shape[0]
    xb = jnp.concatenate([x, jnp.full((n, 1), 1.0 - EPS, x.dtype)], axis=-1)
    lx = jnp.log(xb / (1.0 - xb))
    y = (lx @ ww.T).reshape(n, NGATE, num_out)
    gv = (z @ gw.T + gb).reshape(n, HALF_SPACES, num_out)
    bits = (gv > 0).astype(jnp.int32)
    choice = jnp.zeros((n, 1, num_out), jnp.int32)
    for i in range(HALF_SPACES):
        choice = choice + bits[:, i:i + 1, :] * (2 ** i)
    sel = jnp.take_along_axis(y, choice, axis=1).reshape(n, num_out)
    return jnp.clip(jax.nn.sigmoid(sel), EPS, 1.0 - EPS)


def reference_forward(x, p):
    x2 = x[0]
    outs = []
    for c in range(OUTPUT_SIZE):
        z = x2
        x0 = jnp.clip(z, EPS, 1.0 - EPS)
        p1 = _gln_layer_ref(x0, z, p["gw0"][c], p["gb0"][c], p["ww0"][c], K0)
        p2 = _gln_layer_ref(p1, z, p["gw1"][c], p["gb1"][c], p["ww1"][c], 1)
        outs.append(p2)
    b = jnp.concatenate(outs, axis=-1)                # [N, C]
    b = b @ p["fhw"].T + p["fhb"]
    alphas = jax.nn.sigmoid(x2 @ p["f2w"].T + p["f2b"])
    b = b * alphas
    seq = [jnp.maximum(b[0], 0.0)]
    for i in range(1, SEQ_LEN):
        seq.append(jnp.maximum(b[i] + jnp.roll(seq[-1], 1, -1), 0.0))
    out = jnp.stack(seq, 0)
    return out[None], out[-1][None]


# ---------------------------------------------------------------------------
if __name__ == "__main__":
    key = jax.random.PRNGKey(0)
    ks = jax.random.split(key, 10)
    C, D, H = OUTPUT_SIZE, INPUT_SIZE, HIDDEN_SIZE

    # GLN layer-0 params per class (gates: row-normalized randn; weights: 1/(Din+1))
    gw0 = jax.random.normal(ks[0], (C, HALF_SPACES * K0, D), jnp.float32)
    gw0 = gw0 / jnp.sqrt(jnp.sum(gw0 ** 2, axis=-1, keepdims=True))
    gb0 = jax.random.normal(ks[1], (C, HALF_SPACES * K0), jnp.float32)
    ww0 = jnp.full((C, NGATE * K0, D + 1), 1.0 / (D + 1), jnp.float32)
    # GLN layer-1 params per class
    gw1 = jax.random.normal(ks[2], (C, HALF_SPACES * 1, D), jnp.float32)
    gw1 = gw1 / jnp.sqrt(jnp.sum(gw1 ** 2, axis=-1, keepdims=True))
    gb1 = jax.random.normal(ks[3], (C, HALF_SPACES * 1), jnp.float32)
    ww1 = jnp.full((C, NGATE * 1, K0 + 1), 1.0 / (K0 + 1), jnp.float32)
    # fc_h: Linear(C -> H), fc2: Linear(D -> H)
    fhw = jax.random.normal(ks[4], (H, C), jnp.float32) / jnp.sqrt(C)
    fhb = jax.random.normal(ks[5], (H,), jnp.float32) * 0.1
    f2w = jax.random.normal(ks[6], (H, D), jnp.float32) / jnp.sqrt(D)
    f2b = jax.random.normal(ks[7], (H,), jnp.float32) * 0.1

    params = dict(gw0=gw0, gb0=gb0, ww0=ww0, gw1=gw1, gb1=gb1, ww1=ww1,
                  fhw=fhw, fhb=fhb, f2w=f2w, f2b=f2b)
    packed = jax.tree_util.tree_map(jax.block_until_ready, pack_params(params))

    # input probabilities in (0,1) (no-embedding path), batch=1
    x = jax.random.uniform(ks[8], (1, SEQ_LEN, D), jnp.float32,
                           minval=0.01, maxval=0.99)

    outputs, hidden = online_srnn_gln_forward(x, packed)
    outputs, hidden = jax.block_until_ready((outputs, hidden))

    ref_out, ref_hid = reference_forward(x, params)
    assert outputs.shape == (1, SEQ_LEN, H) and hidden.shape == (1, H)
    assert jnp.allclose(outputs, ref_out, atol=1e-3, rtol=1e-3)
    assert jnp.allclose(hidden, ref_hid, atol=1e-3, rtol=1e-3)
    print("KERNEL_OK")
</pallas_src>

<mosaic_0001>
module attributes {stable_mosaic.version = 11 : i64} {
  func.func @fused_kernel(%arg0: memref<8x16xf32, #tpu.memory_space<vmem>>, %arg1: memref<16x128xf32, #tpu.memory_space<vmem>>, %arg2: memref<1x128xf32, #tpu.memory_space<vmem>>, %arg3: memref<16x256xf32, #tpu.memory_space<vmem>>, %arg4: memref<1x256xf32, #tpu.memory_space<vmem>>, %arg5: memref<16x8xf32, #tpu.memory_space<vmem>>, %arg6: memref<1x8xf32, #tpu.memory_space<vmem>>, %arg7: memref<64x16xf32, #tpu.memory_space<vmem>>, %arg8: memref<1x16xf32, #tpu.memory_space<vmem>>, %arg9: memref<4x32xf32, #tpu.memory_space<vmem>>, %arg10: memref<1x32xf32, #tpu.memory_space<vmem>>, %arg11: memref<16x32xf32, #tpu.memory_space<vmem>>, %arg12: memref<1x32xf32, #tpu.memory_space<vmem>>, %arg13: memref<32x32xf32, #tpu.memory_space<vmem>>, %arg14: memref<8x32xf32, #tpu.memory_space<vmem>>, %arg15: memref<1x32xf32, #tpu.memory_space<vmem>>) attributes {dimension_semantics = [], scalar_prefetch = 0 : i64, scratch_operands = 0 : i64, tpu.core_type = #tpu.core_type<tc>} {
    %c0 = arith.constant 0 : index
    %c0_0 = arith.constant 0 : index
    %0 = vector.load %arg0[%c0, %c0_0] : memref<8x16xf32, #tpu.memory_space<vmem>>, vector<8x16xf32>
    %cst = arith.constant 9.990000e+02 : f32
    %1 = math.log %cst : f32
    %cst_1 = arith.constant 1.000000e-03 : f32
    %cst_2 = arith.constant 9.990000e-01 : f32
    %2 = vector.broadcast %cst_1 : f32 to vector<8x16xf32>
    %3 = arith.maximumf %2, %0 : vector<8x16xf32>
    %4 = vector.broadcast %cst_2 : f32 to vector<8x16xf32>
    %5 = arith.minimumf %4, %3 : vector<8x16xf32>
    %cst_3 = arith.constant 1.000000e+00 : f32
    %6 = vector.broadcast %cst_3 : f32 to vector<8x16xf32>
    %7 = arith.subf %6, %5 : vector<8x16xf32>
    %8 = arith.divf %5, %7 : vector<8x16xf32>
    %9 = math.log %8 : vector<8x16xf32>
    %c0_4 = arith.constant 0 : index
    %c0_5 = arith.constant 0 : index
    %10 = vector.load %arg3[%c0_4, %c0_5] : memref<16x256xf32, #tpu.memory_space<vmem>>, vector<16x256xf32>
    %cst_6 = arith.constant dense<0.000000e+00> : vector<8x256xf32>
    %11 = tpu.matmul %9, %10, %cst_6 {dimension_numbers = #tpu.dot_dimension_numbers<[1], [0], [0], [1], [0, 0, 1, 1], [], []>} : vector<8x16xf32>, vector<16x256xf32>, vector<8x256xf32> -> vector<8x256xf32>
    %c0_7 = arith.constant 0 : index
    %c0_8 = arith.constant 0 : index
    %12 = vector.load %arg4[%c0_7, %c0_8] : memref<1x256xf32, #tpu.memory_space<vmem>>, vector<1x256xf32>
    %13 = vector.broadcast %1 : f32 to vector<1x256xf32>
    %14 = arith.mulf %13, %12 : vector<1x256xf32>
    %15 = vector.broadcast %14 : vector<1x256xf32> to vector<8x256xf32>
    %16 = arith.addf %11, %15 : vector<8x256xf32>
    %c0_9 = arith.constant 0 : index
    %c0_10 = arith.constant 0 : index
    %17 = vector.load %arg1[%c0_9, %c0_10] : memref<16x128xf32, #tpu.memory_space<vmem>>, vector<16x128xf32>
    %cst_11 = arith.constant dense<0.000000e+00> : vector<8x128xf32>
    %18 = tpu.matmul %0, %17, %cst_11 {dimension_numbers = #tpu.dot_dimension_numbers<[1], [0], [0], [1], [0, 0, 1, 1], [], []>} : vector<8x16xf32>, vector<16x128xf32>, vector<8x128xf32> -> vector<8x128xf32>
    %c0_12 = arith.constant 0 : index
    %c0_13 = arith.constant 0 : index
    %19 = vector.load %arg2[%c0_12, %c0_13] : memref<1x128xf32, #tpu.memory_space<vmem>>, vector<1x128xf32>
    %20 = vector.broadcast %19 : vector<1x128xf32> to vector<8x128xf32>
    %21 = arith.addf %18, %20 : vector<8x128xf32>
    %c0_i32 = arith.constant 0 : i32
    %22 = vector.broadcast %c0_i32 : i32 to vector<8x64xi32>
    %23 = vector.extract_strided_slice %21 {offsets = [0, 0], sizes = [8, 64], strides = [1, 1]} : vector<8x128xf32> to vector<8x64xf32>
    %cst_14 = arith.constant 0.000000e+00 : f32
    %24 = vector.broadcast %cst_14 : f32 to vector<8x64xf32>
    %25 = arith.cmpf ogt, %23, %24 : vector<8x64xf32>
    %26 = arith.extui %25 : vector<8x64xi1> to vector<8x64xi32>
    %c1_i32 = arith.constant 1 : i32
    %27 = vector.broadcast %c1_i32 : i32 to vector<8x64xi32>
    %28 = arith.muli %26, %27 : vector<8x64xi32>
    %29 = arith.addi %22, %28 : vector<8x64xi32>
    %30 = vector.extract_strided_slice %21 {offsets = [0, 64], sizes = [8, 64], strides = [1, 1]} : vector<8x128xf32> to vector<8x64xf32>
    %cst_15 = arith.constant 0.000000e+00 : f32
    %31 = vector.broadcast %cst_15 : f32 to vector<8x64xf32>
    %32 = arith.cmpf ogt, %30, %31 : vector<8x64xf32>
    %33 = arith.extui %32 : vector<8x64xi1> to vector<8x64xi32>
    %c2_i32 = arith.constant 2 : i32
    %34 = vector.broadcast %c2_i32 : i32 to vector<8x64xi32>
    %35 = arith.muli %33, %34 : vector<8x64xi32>
    %36 = arith.addi %29, %35 : vector<8x64xi32>
    %cst_16 = arith.constant 0.000000e+00 : f32
    %37 = vector.broadcast %cst_16 : f32 to vector<8x64xf32>
    %c0_i32_17 = arith.constant 0 : i32
    %38 = vector.broadcast %c0_i32_17 : i32 to vector<8x64xi32>
    %39 = arith.cmpi eq, %36, %38 : vector<8x64xi32>
    %40 = vector.extract_strided_slice %16 {offsets = [0, 0], sizes = [8, 64], strides = [1, 1]} : vector<8x256xf32> to vector<8x64xf32>
    %cst_18 = arith.constant 0.000000e+00 : f32
    %41 = vector.broadcast %cst_18 : f32 to vector<8x64xf32>
    %42 = arith.select %39, %40, %41 : vector<8x64xi1>, vector<8x64xf32>
    %43 = arith.addf %37, %42 : vector<8x64xf32>
    %c1_i32_19 = arith.constant 1 : i32
    %44 = vector.broadcast %c1_i32_19 : i32 to vector<8x64xi32>
    %45 = arith.cmpi eq, %36, %44 : vector<8x64xi32>
    %46 = vector.extract_strided_slice %16 {offsets = [0, 64], sizes = [8, 64], strides = [1, 1]} : vector<8x256xf32> to vector<8x64xf32>
    %cst_20 = arith.constant 0.000000e+00 : f32
    %47 = vector.broadcast %cst_20 : f32 to vector<8x64xf32>
    %48 = arith.select %45, %46, %47 : vector<8x64xi1>, vector<8x64xf32>
    %49 = arith.addf %43, %48 : vector<8x64xf32>
    %c2_i32_21 = arith.constant 2 : i32
    %50 = vector.broadcast %c2_i32_21 : i32 to vector<8x64xi32>
    %51 = arith.cmpi eq, %36, %50 : vector<8x64xi32>
    %52 = vector.extract_strided_slice %16 {offsets = [0, 128], sizes = [8, 64], strides = [1, 1]} : vector<8x256xf32> to vector<8x64xf32>
    %cst_22 = arith.constant 0.000000e+00 : f32
    %53 = vector.broadcast %cst_22 : f32 to vector<8x64xf32>
    %54 = arith.select %51, %52, %53 : vector<8x64xi1>, vector<8x64xf32>
    %55 = arith.addf %49, %54 : vector<8x64xf32>
    %c3_i32 = arith.constant 3 : i32
    %56 = vector.broadcast %c3_i32 : i32 to vector<8x64xi32>
    %57 = arith.cmpi eq, %36, %56 : vector<8x64xi32>
    %58 = vector.extract_strided_slice %16 {offsets = [0, 192], sizes = [8, 64], strides = [1, 1]} : vector<8x256xf32> to vector<8x64xf32>
    %cst_23 = arith.constant 0.000000e+00 : f32
    %59 = vector.broadcast %cst_23 : f32 to vector<8x64xf32>
    %60 = arith.select %57, %58, %59 : vector<8x64xi1>, vector<8x64xf32>
    %61 = arith.addf %55, %60 : vector<8x64xf32>
    %62 = arith.negf %61 : vector<8x64xf32>
    %63 = math.exp %62 : vector<8x64xf32>
    %cst_24 = arith.constant 1.000000e+00 : f32
    %64 = vector.broadcast %cst_24 : f32 to vector<8x64xf32>
    %65 = arith.addf %64, %63 : vector<8x64xf32>
    %66 = arith.divf %64, %65 : vector<8x64xf32>
    %cst_25 = arith.constant 1.000000e-03 : f32
    %cst_26 = arith.constant 9.990000e-01 : f32
    %67 = vector.broadcast %cst_25 : f32 to vector<8x64xf32>
    %68 = arith.maximumf %67, %66 : vector<8x64xf32>
    %69 = vector.broadcast %cst_26 : f32 to vector<8x64xf32>
    %70 = arith.minimumf %69, %68 : vector<8x64xf32>
    %cst_27 = arith.constant 1.000000e+00 : f32
    %71 = vector.broadcast %cst_27 : f32 to vector<8x64xf32>
    %72 = arith.subf %71, %70 : vector<8x64xf32>
    %73 = arith.divf %70, %72 : vector<8x64xf32>
    %74 = math.log %73 : vector<8x64xf32>
    %c0_28 = arith.constant 0 : index
    %c0_29 = arith.constant 0 : index
    %75 = vector.load %arg7[%c0_28, %c0_29] : memref<64x16xf32, #tpu.memory_space<vmem>>, vector<64x16xf32>
    %cst_30 = arith.constant dense<0.000000e+00> : vector<8x16xf32>
    %76 = tpu.matmul %74, %75, %cst_30 {dimension_numbers = #tpu.dot_dimension_numbers<[1], [0], [0], [1], [0, 0, 1, 1], [], []>} : vector<8x64xf32>, vector<64x16xf32>, vector<8x16xf32> -> vector<8x16xf32>
    %c0_31 = arith.constant 0 : index
    %c0_32 = arith.constant 0 : index
    %77 = vector.load %arg8[%c0_31, %c0_32] : memref<1x16xf32, #tpu.memory_space<vmem>>, vector<1x16xf32>
    %78 = vector.broadcast %1 : f32 to vector<1x16xf32>
    %79 = arith.mulf %78, %77 : vector<1x16xf32>
    %80 = vector.broadcast %79 : vector<1x16xf32> to vector<8x16xf32>
    %81 = arith.addf %76, %80 : vector<8x16xf32>
    %c0_33 = arith.constant 0 : index
    %c0_34 = arith.constant 0 : index
    %82 = vector.load %arg5[%c0_33, %c0_34] : memref<16x8xf32, #tpu.memory_space<vmem>>, vector<16x8xf32>
    %cst_35 = arith.constant dense<0.000000e+00> : vector<8x8xf32>
    %83 = tpu.matmul %0, %82, %cst_35 {dimension_numbers = #tpu.dot_dimension_numbers<[1], [0], [0], [1], [0, 0, 1, 1], [], []>} : vector<8x16xf32>, vector<16x8xf32>, vector<8x8xf32> -> vector<8x8xf32>
    %c0_36 = arith.constant 0 : index
    %c0_37 = arith.constant 0 : index
    %84 = vector.load %arg6[%c0_36, %c0_37] : memref<1x8xf32, #tpu.memory_space<vmem>>, vector<1x8xf32>
    %85 = vector.broadcast %84 : vector<1x8xf32> to vector<8x8xf32>
    %86 = arith.addf %83, %85 : vector<8x8xf32>
    %c0_i32_38 = arith.constant 0 : i32
    %87 = vector.broadcast %c0_i32_38 : i32 to vector<8x4xi32>
    %88 = vector.extract_strided_slice %86 {offsets = [0, 0], sizes = [8, 4], strides = [1, 1]} : vector<8x8xf32> to vector<8x4xf32>
    %cst_39 = arith.constant 0.000000e+00 : f32
    %89 = vector.broadcast %cst_39 : f32 to vector<8x4xf32>
    %90 = arith.cmpf ogt, %88, %89 : vector<8x4xf32>
    %91 = arith.extui %90 : vector<8x4xi1> to vector<8x4xi32>
    %c1_i32_40 = arith.constant 1 : i32
    %92 = vector.broadcast %c1_i32_40 : i32 to vector<8x4xi32>
    %93 = arith.muli %91, %92 : vector<8x4xi32>
    %94 = arith.addi %87, %93 : vector<8x4xi32>
    %95 = vector.extract_strided_slice %86 {offsets = [0, 4], sizes = [8, 4], strides = [1, 1]} : vector<8x8xf32> to vector<8x4xf32>
    %cst_41 = arith.constant 0.000000e+00 : f32
    %96 = vector.broadcast %cst_41 : f32 to vector<8x4xf32>
    %97 = arith.cmpf ogt, %95, %96 : vector<8x4xf32>
    %98 = arith.extui %97 : vector<8x4xi1> to vector<8x4xi32>
    %c2_i32_42 = arith.constant 2 : i32
    %99 = vector.broadcast %c2_i32_42 : i32 to vector<8x4xi32>
    %100 = arith.muli %98, %99 : vector<8x4xi32>
    %101 = arith.addi %94, %100 : vector<8x4xi32>
    %cst_43 = arith.constant 0.000000e+00 : f32
    %102 = vector.broadcast %cst_43 : f32 to vector<8x4xf32>
    %c0_i32_44 = arith.constant 0 : i32
    %103 = vector.broadcast %c0_i32_44 : i32 to vector<8x4xi32>
    %104 = arith.cmpi eq, %101, %103 : vector<8x4xi32>
    %105 = vector.extract_strided_slice %81 {offsets = [0, 0], sizes = [8, 4], strides = [1, 1]} : vector<8x16xf32> to vector<8x4xf32>
    %cst_45 = arith.constant 0.000000e+00 : f32
    %106 = vector.broadcast %cst_45 : f32 to vector<8x4xf32>
    %107 = arith.select %104, %105, %106 : vector<8x4xi1>, vector<8x4xf32>
    %108 = arith.addf %102, %107 : vector<8x4xf32>
    %c1_i32_46 = arith.constant 1 : i32
    %109 = vector.broadcast %c1_i32_46 : i32 to vector<8x4xi32>
    %110 = arith.cmpi eq, %101, %109 : vector<8x4xi32>
    %111 = vector.extract_strided_slice %81 {offsets = [0, 4], sizes = [8, 4], strides = [1, 1]} : vector<8x16xf32> to vector<8x4xf32>
    %cst_47 = arith.constant 0.000000e+00 : f32
    %112 = vector.broadcast %cst_47 : f32 to vector<8x4xf32>
    %113 = arith.select %110, %111, %112 : vector<8x4xi1>, vector<8x4xf32>
    %114 = arith.addf %108, %113 : vector<8x4xf32>
    %c2_i32_48 = arith.constant 2 : i32
    %115 = vector.broadcast %c2_i32_48 : i32 to vector<8x4xi32>
    %116 = arith.cmpi eq, %101, %115 : vector<8x4xi32>
    %117 = vector.extract_strided_slice %81 {offsets = [0, 8], sizes = [8, 4], strides = [1, 1]} : vector<8x16xf32> to vector<8x4xf32>
    %cst_49 = arith.constant 0.000000e+00 : f32
    %118 = vector.broadcast %cst_49 : f32 to vector<8x4xf32>
    %119 = arith.select %116, %117, %118 : vector<8x4xi1>, vector<8x4xf32>
    %120 = arith.addf %114, %119 : vector<8x4xf32>
    %c3_i32_50 = arith.constant 3 : i32
    %121 = vector.broadcast %c3_i32_50 : i32 to vector<8x4xi32>
    %122 = arith.cmpi eq, %101, %121 : vector<8x4xi32>
    %123 = vector.extract_strided_slice %81 {offsets = [0, 12], sizes = [8, 4], strides = [1, 1]} : vector<8x16xf32> to vector<8x4xf32>
    %cst_51 = arith.constant 0.000000e+00 : f32
    %124 = vector.broadcast %cst_51 : f32 to vector<8x4xf32>
    %125 = arith.select %122, %123, %124 : vector<8x4xi1>, vector<8x4xf32>
    %126 = arith.addf %120, %125 : vector<8x4xf32>
    %127 = arith.negf %126 : vector<8x4xf32>
    %128 = math.exp %127 : vector<8x4xf32>
    %cst_52 = arith.constant 1.000000e+00 : f32
    %129 = vector.broadcast %cst_52 : f32 to vector<8x4xf32>
    %130 = arith.addf %129, %128 : vector<8x4xf32>
    %131 = arith.divf %129, %130 : vector<8x4xf32>
    %cst_53 = arith.constant 1.000000e-03 : f32
    %cst_54 = arith.constant 9.990000e-01 : f32
    %132 = vector.broadcast %cst_53 : f32 to vector<8x4xf32>
    %133 = arith.maximumf %132, %131 : vector<8x4xf32>
    %134 = vector.broadcast %cst_54 : f32 to vector<8x4xf32>
    %135 = arith.minimumf %134, %133 : vector<8x4xf32>
    %c0_55 = arith.constant 0 : index
    %c0_56 = arith.constant 0 : index
    %136 = vector.load %arg9[%c0_55, %c0_56] : memref<4x32xf32, #tpu.memory_space<vmem>>, vector<4x32xf32>
    %cst_57 = arith.constant dense<0.000000e+00> : vector<8x32xf32>
    %137 = tpu.matmul %135, %136, %cst_57 {dimension_numbers = #tpu.dot_dimension_numbers<[1], [0], [0], [1], [0, 0, 1, 1], [], []>} : vector<8x4xf32>, vector<4x32xf32>, vector<8x32xf32> -> vector<8x32xf32>
    %c0_58 = arith.constant 0 : index
    %c0_59 = arith.constant 0 : index
    %138 = vector.load %arg10[%c0_58, %c0_59] : memref<1x32xf32, #tpu.memory_space<vmem>>, vector<1x32xf32>
    %139 = vector.broadcast %138 : vector<1x32xf32> to vector<8x32xf32>
    %140 = arith.addf %137, %139 : vector<8x32xf32>
    %c0_60 = arith.constant 0 : index
    %c0_61 = arith.constant 0 : index
    %141 = vector.load %arg11[%c0_60, %c0_61] : memref<16x32xf32, #tpu.memory_space<vmem>>, vector<16x32xf32>
    %cst_62 = arith.constant dense<0.000000e+00> : vector<8x32xf32>
    %142 = tpu.matmul %0, %141, %cst_62 {dimension_numbers = #tpu.dot_dimension_numbers<[1], [0], [0], [1], [0, 0, 1, 1], [], []>} : vector<8x16xf32>, vector<16x32xf32>, vector<8x32xf32> -> vector<8x32xf32>
    %c0_63 = arith.constant 0 : index
    %c0_64 = arith.constant 0 : index
    %143 = vector.load %arg12[%c0_63, %c0_64] : memref<1x32xf32, #tpu.memory_space<vmem>>, vector<1x32xf32>
    %144 = vector.broadcast %143 : vector<1x32xf32> to vector<8x32xf32>
    %145 = arith.addf %142, %144 : vector<8x32xf32>
    %146 = arith.negf %145 : vector<8x32xf32>
    %147 = math.exp %146 : vector<8x32xf32>
    %cst_65 = arith.constant 1.000000e+00 : f32
    %148 = vector.broadcast %cst_65 : f32 to vector<8x32xf32>
    %149 = arith.addf %148, %147 : vector<8x32xf32>
    %150 = arith.divf %148, %149 : vector<8x32xf32>
    %151 = arith.mulf %140, %150 : vector<8x32xf32>
    %c0_66 = arith.constant 0 : index
    %c0_67 = arith.constant 0 : index
    %152 = vector.load %arg13[%c0_66, %c0_67] : memref<32x32xf32, #tpu.memory_space<vmem>>, vector<32x32xf32>
    %153 = vector.extract_strided_slice %151 {offsets = [0, 0], sizes = [1, 32], strides = [1, 1]} : vector<8x32xf32> to vector<1x32xf32>
    %cst_68 = arith.constant 0.000000e+00 : f32
    %154 = vector.broadcast %cst_68 : f32 to vector<1x32xf32>
    %155 = arith.maximumf %153, %154 : vector<1x32xf32>
    %c0_69 = arith.constant 0 : index
    %c0_70 = arith.constant 0 : index
    %156 = vector.load %arg14[%c0_69, %c0_70] : memref<8x32xf32, #tpu.memory_space<vmem>>, vector<1x32xf32>
    tpu.vector_store %arg14[%c0_69, %c0_70], %155 {strides = array<i32>} : memref<8x32xf32, #tpu.memory_space<vmem>>, vector<1x32xf32>,
    %cst_71 = arith.constant dense<0.000000e+00> : vector<1x32xf32>
    %157 = tpu.matmul %155, %152, %cst_71 {dimension_numbers = #tpu.dot_dimension_numbers<[1], [0], [0], [1], [0, 0, 1, 1], [], []>} : vector<1x32xf32>, vector<32x32xf32>, vector<1x32xf32> -> vector<1x32xf32>
    %158 = vector.extract_strided_slice %151 {offsets = [1, 0], sizes = [1, 32], strides = [1, 1]} : vector<8x32xf32> to vector<1x32xf32>
    %159 = arith.addf %158, %157 : vector<1x32xf32>
    %cst_72 = arith.constant 0.000000e+00 : f32
    %160 = vector.broadcast %cst_72 : f32 to vector<1x32xf32>
    %161 = arith.maximumf %159, %160 : vector<1x32xf32>
    %c1 = arith.constant 1 : index
    %c0_73 = arith.constant 0 : index
    %162 = vector.load %arg14[%c1, %c0_73] : memref<8x32xf32, #tpu.memory_space<vmem>>, vector<1x32xf32>
    tpu.vector_store %arg14[%c1, %c0_73], %161 {strides = array<i32>} : memref<8x32xf32, #tpu.memory_space<vmem>>, vector<1x32xf32>,
    %cst_74 = arith.constant dense<0.000000e+00> : vector<1x32xf32>
    %163 = tpu.matmul %161, %152, %cst_74 {dimension_numbers = #tpu.dot_dimension_numbers<[1], [0], [0], [1], [0, 0, 1, 1], [], []>} : vector<1x32xf32>, vector<32x32xf32>, vector<1x32xf32> -> vector<1x32xf32>
    %164 = vector.extract_strided_slice %151 {offsets = [2, 0], sizes = [1, 32], strides = [1, 1]} : vector<8x32xf32> to vector<1x32xf32>
    %165 = arith.addf %164, %163 : vector<1x32xf32>
    %cst_75 = arith.constant 0.000000e+00 : f32
    %166 = vector.broadcast %cst_75 : f32 to vector<1x32xf32>
    %167 = arith.maximumf %165, %166 : vector<1x32xf32>
    %c2 = arith.constant 2 : index
    %c0_76 = arith.constant 0 : index
    %168 = vector.load %arg14[%c2, %c0_76] : memref<8x32xf32, #tpu.memory_space<vmem>>, vector<1x32xf32>
    tpu.vector_store %arg14[%c2, %c0_76], %167 {strides = array<i32>} : memref<8x32xf32, #tpu.memory_space<vmem>>, vector<1x32xf32>,
    %cst_77 = arith.constant dense<0.000000e+00> : vector<1x32xf32>
    %169 = tpu.matmul %167, %152, %cst_77 {dimension_numbers = #tpu.dot_dimension_numbers<[1], [0], [0], [1], [0, 0, 1, 1], [], []>} : vector<1x32xf32>, vector<32x32xf32>, vector<1x32xf32> -> vector<1x32xf32>
    %170 = vector.extract_strided_slice %151 {offsets = [3, 0], sizes = [1, 32], strides = [1, 1]} : vector<8x32xf32> to vector<1x32xf32>
    %171 = arith.addf %170, %169 : vector<1x32xf32>
    %cst_78 = arith.constant 0.000000e+00 : f32
    %172 = vector.broadcast %cst_78 : f32 to vector<1x32xf32>
    %173 = arith.maximumf %171, %172 : vector<1x32xf32>
    %c3 = arith.constant 3 : index
    %c0_79 = arith.constant 0 : index
    %174 = vector.load %arg14[%c3, %c0_79] : memref<8x32xf32, #tpu.memory_space<vmem>>, vector<1x32xf32>
    tpu.vector_store %arg14[%c3, %c0_79], %173 {strides = array<i32>} : memref<8x32xf32, #tpu.memory_space<vmem>>, vector<1x32xf32>,
    %cst_80 = arith.constant dense<0.000000e+00> : vector<1x32xf32>
    %175 = tpu.matmul %173, %152, %cst_80 {dimension_numbers = #tpu.dot_dimension_numbers<[1], [0], [0], [1], [0, 0, 1, 1], [], []>} : vector<1x32xf32>, vector<32x32xf32>, vector<1x32xf32> -> vector<1x32xf32>
    %176 = vector.extract_strided_slice %151 {offsets = [4, 0], sizes = [1, 32], strides = [1, 1]} : vector<8x32xf32> to vector<1x32xf32>
    %177 = arith.addf %176, %175 : vector<1x32xf32>
    %cst_81 = arith.constant 0.000000e+00 : f32
    %178 = vector.broadcast %cst_81 : f32 to vector<1x32xf32>
    %179 = arith.maximumf %177, %178 : vector<1x32xf32>
    %c4 = arith.constant 4 : index
    %c0_82 = arith.constant 0 : index
    %180 = vector.load %arg14[%c4, %c0_82] : memref<8x32xf32, #tpu.memory_space<vmem>>, vector<1x32xf32>
    tpu.vector_store %arg14[%c4, %c0_82], %179 {strides = array<i32>} : memref<8x32xf32, #tpu.memory_space<vmem>>, vector<1x32xf32>,
    %cst_83 = arith.constant dense<0.000000e+00> : vector<1x32xf32>
    %181 = tpu.matmul %179, %152, %cst_83 {dimension_numbers = #tpu.dot_dimension_numbers<[1], [0], [0], [1], [0, 0, 1, 1], [], []>} : vector<1x32xf32>, vector<32x32xf32>, vector<1x32xf32> -> vector<1x32xf32>
    %182 = vector.extract_strided_slice %151 {offsets = [5, 0], sizes = [1, 32], strides = [1, 1]} : vector<8x32xf32> to vector<1x32xf32>
    %183 = arith.addf %182, %181 : vector<1x32xf32>
    %cst_84 = arith.constant 0.000000e+00 : f32
    %184 = vector.broadcast %cst_84 : f32 to vector<1x32xf32>
    %185 = arith.maximumf %183, %184 : vector<1x32xf32>
    %c5 = arith.constant 5 : index
    %c0_85 = arith.constant 0 : index
    %186 = vector.load %arg14[%c5, %c0_85] : memref<8x32xf32, #tpu.memory_space<vmem>>, vector<1x32xf32>
    tpu.vector_store %arg14[%c5, %c0_85], %185 {strides = array<i32>} : memref<8x32xf32, #tpu.memory_space<vmem>>, vector<1x32xf32>,
    %cst_86 = arith.constant dense<0.000000e+00> : vector<1x32xf32>
    %187 = tpu.matmul %185, %152, %cst_86 {dimension_numbers = #tpu.dot_dimension_numbers<[1], [0], [0], [1], [0, 0, 1, 1], [], []>} : vector<1x32xf32>, vector<32x32xf32>, vector<1x32xf32> -> vector<1x32xf32>
    %188 = vector.extract_strided_slice %151 {offsets = [6, 0], sizes = [1, 32], strides = [1, 1]} : vector<8x32xf32> to vector<1x32xf32>
    %189 = arith.addf %188, %187 : vector<1x32xf32>
    %cst_87 = arith.constant 0.000000e+00 : f32
    %190 = vector.broadcast %cst_87 : f32 to vector<1x32xf32>
    %191 = arith.maximumf %189, %190 : vector<1x32xf32>
    %c6 = arith.constant 6 : index
    %c0_88 = arith.constant 0 : index
    %192 = vector.load %arg14[%c6, %c0_88] : memref<8x32xf32, #tpu.memory_space<vmem>>, vector<1x32xf32>
    tpu.vector_store %arg14[%c6, %c0_88], %191 {strides = array<i32>} : memref<8x32xf32, #tpu.memory_space<vmem>>, vector<1x32xf32>,
    %cst_89 = arith.constant dense<0.000000e+00> : vector<1x32xf32>
    %193 = tpu.matmul %191, %152, %cst_89 {dimension_numbers = #tpu.dot_dimension_numbers<[1], [0], [0], [1], [0, 0, 1, 1], [], []>} : vector<1x32xf32>, vector<32x32xf32>, vector<1x32xf32> -> vector<1x32xf32>
    %194 = vector.extract_strided_slice %151 {offsets = [7, 0], sizes = [1, 32], strides = [1, 1]} : vector<8x32xf32> to vector<1x32xf32>
    %195 = arith.addf %194, %193 : vector<1x32xf32>
    %cst_90 = arith.constant 0.000000e+00 : f32
    %196 = vector.broadcast %cst_90 : f32 to vector<1x32xf32>
    %197 = arith.maximumf %195, %196 : vector<1x32xf32>
    %c7 = arith.constant 7 : index
    %c0_91 = arith.constant 0 : index
    %198 = vector.load %arg14[%c7, %c0_91] : memref<8x32xf32, #tpu.memory_space<vmem>>, vector<1x32xf32>
    tpu.vector_store %arg14[%c7, %c0_91], %197 {strides = array<i32>} : memref<8x32xf32, #tpu.memory_space<vmem>>, vector<1x32xf32>,
    %c0_92 = arith.constant 0 : index
    %c0_93 = arith.constant 0 : index
    %199 = vector.load %arg15[%c0_92, %c0_93] : memref<1x32xf32, #tpu.memory_space<vmem>>, vector<1x32xf32>
    tpu.vector_store %arg15[%c0_92, %c0_93], %197 {strides = array<i32>} : memref<1x32xf32, #tpu.memory_space<vmem>>, vector<1x32xf32>,
    return
  }
}

</mosaic_0001>

<llo_original>
// kernel: online_srnn_gln_forward.1
$region0: #{online_srnn_gln_forward.1}
  #allocation0 [shape = 'u32[]', space=smem, size = 0x4, offset = 0x4, fixed_abs, tag = 'smem constant byte address 0x4 - core index']
  #allocation1 [shape = 'u32[144,128]{1,0:T(1,128)}', space=vmem, size = 0x12000, scoped, tag = 'internal scratch']
  %s0 = inlined_call_operand.hbm [shape: f32[8,16], index: 0, kind: input, shape index: {}]
  %s1 = inlined_call_operand.vmem [shape: f32[16,128], index: 1, kind: input, shape index: {}]
  %s2 = inlined_call_operand.hbm [shape: f32[1,128], index: 2, kind: input, shape index: {}]
  %s3 = inlined_call_operand.vmem [shape: f32[16,256], index: 3, kind: input, shape index: {}]
  %s4 = inlined_call_operand.vmem [shape: f32[1,256], index: 4, kind: input, shape index: {}]
  %s5 = inlined_call_operand.vmem [shape: f32[16,8], index: 5, kind: input, shape index: {}]
  %s6 = inlined_call_operand.hbm [shape: f32[1,8], index: 6, kind: input, shape index: {}]
  %s7 = inlined_call_operand.vmem [shape: f32[64,16], index: 7, kind: input, shape index: {}]
  %s8 = inlined_call_operand.vmem [shape: f32[1,16], index: 8, kind: input, shape index: {}]
  %s9 = inlined_call_operand.hbm [shape: f32[4,32], index: 9, kind: input, shape index: {}]
  %s10 = inlined_call_operand.hbm [shape: f32[1,32], index: 10, kind: input, shape index: {}]
  %s11 = inlined_call_operand.vmem [shape: f32[16,32], index: 11, kind: input, shape index: {}]
  %s12 = inlined_call_operand.hbm [shape: f32[1,32], index: 12, kind: input, shape index: {}]
  %s13 = inlined_call_operand.vmem [shape: f32[32,32], index: 13, kind: input, shape index: {}]
  %s14 = inlined_call_operand.hbm [shape: f32[8,32], index: 14, kind: output, shape index: {0}]
  %s15 = inlined_call_operand.hbm [shape: f32[1,32], index: 15, kind: output, shape index: {1}]
  %16 = xla_tuple %s14, %s15
  %s17 = sld [smem:[#allocation0]]
  $region98: #{online_srnn_gln_forward.1} parent=0
    _
  %s19 = ssub.s32 1, %s17
  %s20 = scalar_select 0, %s19, %s17
  $region1: #{online_srnn_gln_forward.1} parent=0
    #allocation2 [shape = 'u8[4096]{0}', space=vmem, size = 0x1000, scoped, tag = 'input window, operand 0, single buffered']
    #allocation3 [shape = 's32[1]{0}', space=sflag, size = 0x4, scoped, tag = 'scoped memory for online_srnn_gln_forward.1']
    #allocation4 [shape = 's32[1]{0}', space=sflag, size = 0x4, scoped, tag = 'scoped memory for online_srnn_gln_forward.1']
    #allocation5 [shape = 'u8[512]{0}', space=vmem, size = 0x400, scoped, tag = 'input window, operand 2, single buffered']
    #allocation6 [shape = 's32[1]{0}', space=sflag, size = 0x4, scoped, tag = 'scoped memory for online_srnn_gln_forward.1']
    #allocation7 [shape = 'u8[512]{0}', space=vmem, size = 0x400, scoped, tag = 'input window, operand 6, single buffered']
    #allocation8 [shape = 'u8[2048]{0}', space=vmem, size = 0x800, scoped, tag = 'input window, operand 9, single buffered']
    #allocation9 [shape = 's32[1]{0}', space=sflag, size = 0x4, scoped, tag = 'scoped memory for online_srnn_gln_forward.1']
    #allocation10 [shape = 'u8[512]{0}', space=vmem, size = 0x400, scoped, tag = 'input window, operand 10, single buffered']
    #allocation11 [shape = 'u8[512]{0}', space=vmem, size = 0x400, scoped, tag = 'input window, operand 12, single buffered']
    #allocation12 [shape = 's32[1]{0}', space=sflag, size = 0x4, scoped, tag = 'scoped memory for online_srnn_gln_forward.1']
    #allocation13 [shape = 'u8[4096]{0}', space=vmem, size = 0x1000, scoped, tag = 'output window, operand 0, single buffered']
    #allocation14 [shape = 'u8[512]{0}', space=vmem, size = 0x400, scoped, tag = 'output window, operand 1, single buffered']
    #allocation15 [shape = 's32[1]{0}', space=sflag, size = 0x4, scoped, tag = 'scoped memory for online_srnn_gln_forward.1']
    %21 = vsyncpa [#allocation3], 0
    %22 = vsyncpa [#allocation6], 0
    %23 = vsyncpa [#allocation9], 0
    %24 = vsyncpa [#allocation12], 0
    %25 = vsyncpa [#allocation4], 0
    %26 = vsyncpa [#allocation15], 0
    // Predicated region
    $region2: #{online_srnn_gln_forward.1} parent=1 // pred_check
      _
    $region3: #{online_srnn_gln_forward.1} parent=1 // pred_check_branch
      %28 = sbr.rel (0) target = $region5
    $region4: #{online_srnn_gln_forward.1} parent=1 // pred_region
      %s30 = ssub.s32 128, 128
      %31 = vsyncadd [#allocation3], %s30
      %s33 = sshll.u32 [#allocation2], 4
      %s34 = int_to_ptr.vmem [resolvable:$true] %s33
      %36 = dma.hbm_to_vmem [thread:$0]  %s0, 128, %s34, [#allocation3]
    $region5: #{online_srnn_gln_forward.1} parent=1 // pred_fallthru
      _
    // Predicated region
    $region6: #{online_srnn_gln_forward.1} parent=1 // pred_check
      _
    $region7: #{online_srnn_gln_forward.1} parent=1 // pred_check_branch
      %38 = sbr.rel (0) target = $region9
    $region8: #{online_srnn_gln_forward.1} parent=1 // pred_region
      _
    $region9: #{online_srnn_gln_forward.1} parent=1 // pred_fallthru
      _
    // Predicated region
    $region10: #{online_srnn_gln_forward.1} parent=1 // pred_check
      _
    $region11: #{online_srnn_gln_forward.1} parent=1 // pred_check_branch
      %40 = sbr.rel (0) target = $region13
    $region12: #{online_srnn_gln_forward.1} parent=1 // pred_region
      %s42 = ssub.s32 16, 16
      %43 = vsyncadd [#allocation6], %s42
      %s45 = sshll.u32 [#allocation5], 4
      %s46 = int_to_ptr.vmem [resolvable:$true] %s45
      %48 = dma.hbm_to_vmem [thread:$0]  %s2, 16, %s46, [#allocation6]
    $region13: #{online_srnn_gln_forward.1} parent=1 // pred_fallthru
      _
    // Predicated region
    $region14: #{online_srnn_gln_forward.1} parent=1 // pred_check
      _
    $region15: #{online_srnn_gln_forward.1} parent=1 // pred_check_branch
      %50 = sbr.rel (0) target = $region17
    $region16: #{online_srnn_gln_forward.1} parent=1 // pred_region
      _
    $region17: #{online_srnn_gln_forward.1} parent=1 // pred_fallthru
      _
    // Predicated region
    $region18: #{online_srnn_gln_forward.1} parent=1 // pred_check
      _
    $region19: #{online_srnn_gln_forward.1} parent=1 // pred_check_branch
      %52 = sbr.rel (0) target = $region21
    $region20: #{online_srnn_gln_forward.1} parent=1 // pred_region
      _
    $region21: #{online_srnn_gln_forward.1} parent=1 // pred_fallthru
      _
    // Predicated region
    $region22: #{online_srnn_gln_forward.1} parent=1 // pred_check
      _
    $region23: #{online_srnn_gln_forward.1} parent=1 // pred_check_branch
      %54 = sbr.rel (0) target = $region25
    $region24: #{online_srnn_gln_forward.1} parent=1 // pred_region
      _
    $region25: #{online_srnn_gln_forward.1} parent=1 // pred_fallthru
      _
    // Predicated region
    $region26: #{online_srnn_gln_forward.1} parent=1 // pred_check
      _
    $region27: #{online_srnn_gln_forward.1} parent=1 // pred_check_branch
      %56 = sbr.rel (0) target = $region29
    $region28: #{online_srnn_gln_forward.1} parent=1 // pred_region
      %s58 = ssub.s32 16, 16
      %59 = vsyncadd [#allocation6], %s58
      %s61 = sshll.u32 [#allocation7], 4
      %s62 = int_to_ptr.vmem [resolvable:$true] %s61
      %64 = dma.hbm_to_vmem [thread:$0]  %s6, 16, %s62, [#allocation6]
    $region29: #{online_srnn_gln_forward.1} parent=1 // pred_fallthru
      _
    // Predicated region
    $region30: #{online_srnn_gln_forward.1} parent=1 // pred_check
      _
    $region31: #{online_srnn_gln_forward.1} parent=1 // pred_check_branch
      %66 = sbr.rel (0) target = $region33
    $region32: #{online_srnn_gln_forward.1} parent=1 // pred_region
      _
    $region33: #{online_srnn_gln_forward.1} parent=1 // pred_fallthru
      _
    // Predicated region
    $region34: #{online_srnn_gln_forward.1} parent=1 // pred_check
      _
    $region35: #{online_srnn_gln_forward.1} parent=1 // pred_check_branch
      %68 = sbr.rel (0) target = $region37
    $region36: #{online_srnn_gln_forward.1} parent=1 // pred_region
      _
    $region37: #{online_srnn_gln_forward.1} parent=1 // pred_fallthru
      _
    // Predicated region
    $region38: #{online_srnn_gln_forward.1} parent=1 // pred_check
      _
    $region39: #{online_srnn_gln_forward.1} parent=1 // pred_check_branch
      %70 = sbr.rel (0) target = $region41
    $region40: #{online_srnn_gln_forward.1} parent=1 // pred_region
      %s72 = ssub.s32 64, 64
      %73 = vsyncadd [#allocation9], %s72
      %s75 = sshll.u32 [#allocation8], 4
      %s76 = int_to_ptr.vmem [resolvable:$true] %s75
      %78 = dma.hbm_to_vmem [thread:$0]  %s9, 64, %s76, [#allocation9]
    $region41: #{online_srnn_gln_forward.1} parent=1 // pred_fallthru
      _
    // Predicated region
    $region42: #{online_srnn_gln_forward.1} parent=1 // pred_check
      _
    $region43: #{online_srnn_gln_forward.1} parent=1 // pred_check_branch
      %80 = sbr.rel (0) target = $region45
    $region44: #{online_srnn_gln_forward.1} parent=1 // pred_region
      %s82 = ssub.s32 16, 16
      %83 = vsyncadd [#allocation9], %s82
      %s85 = sshll.u32 [#allocation10], 4
      %s86 = int_to_ptr.vmem [resolvable:$true] %s85
      %88 = dma.hbm_to_vmem [thread:$0]  %s10, 16, %s86, [#allocation9]
    $region45: #{online_srnn_gln_forward.1} parent=1 // pred_fallthru
      _
    // Predicated region
    $region46: #{online_srnn_gln_forward.1} parent=1 // pred_check
      _
    $region47: #{online_srnn_gln_forward.1} parent=1 // pred_check_branch
      %90 = sbr.rel (0) target = $region49
    $region48: #{online_srnn_gln_forward.1} parent=1 // pred_region
      _
    $region49: #{online_srnn_gln_forward.1} parent=1 // pred_fallthru
      _
    // Predicated region
    $region50: #{online_srnn_gln_forward.1} parent=1 // pred_check
      _
    $region51: #{online_srnn_gln_forward.1} parent=1 // pred_check_branch
      %92 = sbr.rel (0) target = $region53
    $region52: #{online_srnn_gln_forward.1} parent=1 // pred_region
      %s94 = ssub.s32 16, 16
      %95 = vsyncadd [#allocation12], %s94
      %s97 = sshll.u32 [#allocation11], 4
      %s98 = int_to_ptr.vmem [resolvable:$true] %s97
      %100 = dma.hbm_to_vmem [thread:$0]  %s12, 16, %s98, [#allocation12]
    $region53: #{online_srnn_gln_forward.1} parent=1 // pred_fallthru
      _
    // Predicated region
    $region54: #{online_srnn_gln_forward.1} parent=1 // pred_check
      _
    $region55: #{online_srnn_gln_forward.1} parent=1 // pred_check_branch
      %102 = sbr.rel (0) target = $region57
    $region56: #{online_srnn_gln_forward.1} parent=1 // pred_region
      _
    $region57: #{online_srnn_gln_forward.1} parent=1 // pred_fallthru
      _
    // Predicated region
    $region58: #{online_srnn_gln_forward.1} parent=1 // pred_check
      _
    $region59: #{online_srnn_gln_forward.1} parent=1 // pred_check_branch
      %104 = sbr.rel (0) target = $region61
    $region60: #{online_srnn_gln_forward.1} parent=1 // pred_region
      %105 = dma.done [#allocation3], 128
    $region61: #{online_srnn_gln_forward.1} parent=1 // pred_fallthru
      _
    // Predicated region
    $region62: #{online_srnn_gln_forward.1} parent=1 // pred_check
      _
    $region63: #{online_srnn_gln_forward.1} parent=1 // pred_check_branch
      %107 = sbr.rel (0) target = $region65
    $region64: #{online_srnn_gln_forward.1} parent=1 // pred_region
      %108 = dma.done [#allocation6], 16
    $region65: #{online_srnn_gln_forward.1} parent=1 // pred_fallthru
      _
    // Predicated region
    $region66: #{online_srnn_gln_forward.1} parent=1 // pred_check
      _
    $region67: #{online_srnn_gln_forward.1} parent=1 // pred_check_branch
      %110 = sbr.rel (0) target = $region69
    $region68: #{online_srnn_gln_forward.1} parent=1 // pred_region
      %111 = dma.done [#allocation6], 16
    $region69: #{online_srnn_gln_forward.1} parent=1 // pred_fallthru
      _
    // Predicated region
    $region70: #{online_srnn_gln_forward.1} parent=1 // pred_check
      _
    $region71: #{online_srnn_gln_forward.1} parent=1 // pred_check_branch
      %113 = sbr.rel (0) target = $region73
    $region72: #{online_srnn_gln_forward.1} parent=1 // pred_region
      %114 = dma.done [#allocation9], 64
    $region73: #{online_srnn_gln_forward.1} parent=1 // pred_fallthru
      _
    // Predicated region
    $region74: #{online_srnn_gln_forward.1} parent=1 // pred_check
      _
    $region75: #{online_srnn_gln_forward.1} parent=1 // pred_check_branch
      %116 = sbr.rel (0) target = $region77
    $region76: #{online_srnn_gln_forward.1} parent=1 // pred_region
      %117 = dma.done [#allocation9], 16
    $region77: #{online_srnn_gln_forward.1} parent=1 // pred_fallthru
      _
    // Predicated region
    $region78: #{online_srnn_gln_forward.1} parent=1 // pred_check
      _
    $region79: #{online_srnn_gln_forward.1} parent=1 // pred_check_branch
      %119 = sbr.rel (0) target = $region81
    $region80: #{online_srnn_gln_forward.1} parent=1 // pred_region
      %120 = dma.done [#allocation12], 16
    $region81: #{online_srnn_gln_forward.1} parent=1 // pred_fallthru
      _
    %v121 = vld [vmem:[#allocation2] sm:$0xff]
    %v122 = vmax.f32 %v121, 0.001
    %v123 = vmin.f32 %v122, 0.999
    %v124 = vsub.f32 1.0, %v123
    %v125 = vrcp.pop %v124
    %v126 = vmul.f32 %v123, %v125
    %v127 = vlog2.pop %v126
    %v128 = vmul.f32 %v127, 0.6931472
    %v129 = vld [vmem:[%s3] sm:$0xff]
    %v130 = vld [vmem:[%s3 + $0x8] sm:$0xff]
    %v131 = vld [vmem:[%s3 + $0x10] sm:$0xff]
    %v132 = vld [vmem:[%s3 + $0x18] sm:$0xff]
    %v133 = vld [vmem:[%s4] sm:$0x3]
    %v134 = vmul.f32 %v133, 6.906755
    %v136 = vlaneseq
    %v137 = vshrl.u32 %v136, 7
    %v138 = vsub.s32 0, %v137
    %v139 = vrot.slane %v134, %v138
    %v140 = vlaneseq
    %v141 = vshrl.u32 %v140, 7
    %v142 = vsub.s32 1, %v141
    %v143 = vrot.slane %v134, %v142
    %vm146 = vcmask 130048
    %v148 = vsel %vm146, %v128, 0
    %150 = vmatprep.subr.mxu0 0.0
    %151 = vmatpush1.msra.mxu0 0.0
    %152 = vmatprep.subr.mxu0 0.0
    %153 = vmatpush1.msra.mxu0 0.0
    %154 = vmatprep.subr.mxu0 0.0
    %155 = vmatpush1.msra.mxu0 0.0
    %156 = vmatprep.subr.mxu0 0.0
    %157 = vmatpush1.msra.mxu0 0.0
    %158 = vmatprep.subr.mxu0 0.0
    %159 = vmatpush1.msra.mxu0 0.0
    %160 = vmatprep.subr.mxu0 0.0
    %161 = vmatpush1.msra.mxu0 0.0
    %162 = vmatprep.subr.mxu0 0.0
    %163 = vmatpush1.msra.mxu0 0.0
    %164 = vmatprep.subr.mxu0 0.0
    %165 = vmatpush1.msra.mxu0 0.0
    %166 = vmatprep.subr.mxu0 0.0
    %167 = vmatpush1.msra.mxu0 0.0
    %168 = vmatprep.subr.mxu0 0.0
    %169 = vmatpush1.msra.mxu0 0.0
    %170 = vmatprep.subr.mxu0 0.0
    %171 = vmatpush1.msra.mxu0 0.0
    %172 = vmatprep.subr.mxu0 0.0
    %173 = vmatpush1.msra.mxu0 0.0
    %174 = vmatprep.subr.mxu0 0.0
    %175 = vmatpush1.msra.mxu0 0.0
    %176 = vmatprep.subr.mxu0 0.0
    %177 = vmatpush1.msra.mxu0 0.0
    %178 = vmatprep.subr.mxu0 %v132
    %179 = vmatpush1.msra.mxu0 %v131
    %180 = vmatprep.subr.mxu0 %v130
    %181 = vmatpush1.msra.mxu0 %v129
    %182 = vmatprep.subr.mxu0 0.0
    %183 = vmatpush2.msra.mxu0 0.0
    %184 = vmatprep.subr.mxu0 0.0
    %185 = vmatpush2.msra.mxu0 0.0
    %186 = vmatprep.subr.mxu0 0.0
    %187 = vmatpush2.msra.mxu0 0.0
    %188 = vmatprep.subr.mxu0 0.0
    %189 = vmatpush2.msra.mxu0 0.0
    %190 = vmatprep.subr.mxu0 0.0
    %191 = vmatpush2.msra.mxu0 0.0
    %192 = vmatprep.subr.mxu0 0.0
    %193 = vmatpush2.msra.mxu0 0.0
    %194 = vmatprep.subr.mxu0 0.0
    %195 = vmatpush2.msra.mxu0 0.0
    %196 = vmatprep.subr.mxu0 0.0
    %197 = vmatpush2.msra.mxu0 0.0
    %198 = vmatprep.subr.mxu0 0.0
    %199 = vmatpush2.msra.mxu0 0.0
    %200 = vmatprep.subr.mxu0 0.0
    %201 = vmatpush2.msra.mxu0 0.0
    %202 = vmatprep.subr.mxu0 0.0
    %203 = vmatpush2.msra.mxu0 0.0
    %204 = vmatprep.subr.mxu0 0.0
    %205 = vmatpush2.msra.mxu0 0.0
    %206 = vmatprep.subr.mxu0 0.0
    %207 = vmatpush2.msra.mxu0 0.0
    %208 = vmatprep.subr.mxu0 0.0
    %209 = vmatpush2.msra.mxu0 0.0
    %210 = vmatprep.subr.mxu0 0.0
    %211 = vmatpush2.msra.mxu0 0.0
    %212 = vmatprep.subr.mxu0 0.0
    %213 = vmatpush2.msra.mxu0 0.0
    %214 = vmatprep.mubr.f32.mxu0 0.0
    %215 = vmatmul.mubr.f32.gmra.mxu0 %v148
    %v216 = vpop.f32.mrf.mxu0
    %v217 = vadd.f32 %v139, %v216
    %v218 = vpop.f32.mrf.mxu0
    %v219 = vadd.f32 %v143, %v218
    %220 = vdwg.mxu0
    %v221 = vld [vmem:[%s1] sm:$0xff]
    %v222 = vld [vmem:[%s1 + $0x8] sm:$0xff]
    %v223 = vld [vmem:[#allocation5] sm:$0x1]
    %v225 = vlaneseq
    %v226 = vshrl.u32 %v225, 7
    %v227 = vsub.s32 0, %v226
    %v228 = vrot.slane %v223, %v227
    %v231 = vsel %vm146, %v121, 0
    %233 = vmatprep.subr.mxu0 0.0
    %234 = vmatpush1.msra.mxu0 0.0
    %235 = vmatprep.subr.mxu0 0.0
    %236 = vmatpush1.msra.mxu0 0.0
    %237 = vmatprep.subr.mxu0 0.0
    %238 = vmatpush1.msra.mxu0 0.0
    %239 = vmatprep.subr.mxu0 0.0
    %240 = vmatpush1.msra.mxu0 0.0
    %241 = vmatprep.subr.mxu0 0.0
    %242 = vmatpush1.msra.mxu0 0.0
    %243 = vmatprep.subr.mxu0 0.0
    %244 = vmatpush1.msra.mxu0 0.0
    %245 = vmatprep.subr.mxu0 0.0
    %246 = vmatpush1.msra.mxu0 0.0
    %247 = vmatprep.subr.mxu0 0.0
    %248 = vmatpush1.msra.mxu0 0.0
    %249 = vmatprep.subr.mxu0 0.0
    %250 = vmatpush1.msra.mxu0 0.0
    %251 = vmatprep.subr.mxu0 0.0
    %252 = vmatpush1.msra.mxu0 0.0
    %253 = vmatprep.subr.mxu0 0.0
    %254 = vmatpush1.msra.mxu0 0.0
    %255 = vmatprep.subr.mxu0 0.0
    %256 = vmatpush1.msra.mxu0 0.0
    %257 = vmatprep.subr.mxu0 0.0
    %258 = vmatpush1.msra.mxu0 0.0
    %259 = vmatprep.subr.mxu0 0.0
    %260 = vmatpush1.msra.mxu0 0.0
    %261 = vmatprep.subr.mxu0 0.0
    %262 = vmatpush1.msra.mxu0 %v222
    %263 = vmatprep.subr.mxu0 0.0
    %264 = vmatpush1.msra.mxu0 %v221
    %265 = vmatprep.subr.mxu0 0.0
    %266 = vmatpush2.msra.mxu0 0.0
    %267 = vmatprep.subr.mxu0 0.0
    %268 = vmatpush2.msra.mxu0 0.0
    %269 = vmatprep.subr.mxu0 0.0
    %270 = vmatpush2.msra.mxu0 0.0
    %271 = vmatprep.subr.mxu0 0.0
    %272 = vmatpush2.msra.mxu0 0.0
    %273 = vmatprep.subr.mxu0 0.0
    %274 = vmatpush2.msra.mxu0 0.0
    %275 = vmatprep.subr.mxu0 0.0
    %276 = vmatpush2.msra.mxu0 0.0
    %277 = vmatprep.subr.mxu0 0.0
    %278 = vmatpush2.msra.mxu0 0.0
    %279 = vmatprep.subr.mxu0 0.0
    %280 = vmatpush2.msra.mxu0 0.0
    %281 = vmatprep.subr.mxu0 0.0
    %282 = vmatpush2.msra.mxu0 0.0
    %283 = vmatprep.subr.mxu0 0.0
    %284 = vmatpush2.msra.mxu0 0.0
    %285 = vmatprep.subr.mxu0 0.0
    %286 = vmatpush2.msra.mxu0 0.0
    %287 = vmatprep.subr.mxu0 0.0
    %288 = vmatpush2.msra.mxu0 0.0
    %289 = vmatprep.subr.mxu0 0.0
    %290 = vmatpush2.msra.mxu0 0.0
    %291 = vmatprep.subr.mxu0 0.0
    %292 = vmatpush2.msra.mxu0 0.0
    %293 = vmatprep.subr.mxu0 0.0
    %294 = vmatpush2.msra.mxu0 0.0
    %295 = vmatprep.subr.mxu0 0.0
    %296 = vmatpush2.msra.mxu0 0.0
    %297 = vmatprep.mubr.f32.mxu0 0.0
    %298 = vmatmul.mubr.f32.gmra.mxu0 %v231
    %v299 = vpop.f32.mrf.mxu0
    %v300 = vadd.f32 %v228, %v299
    %v301 = vpop.f32.mrf.mxu0
    %302 = vdwg.mxu0
    %vm303 = vcmp.gt.f32.partialorder %v300, 0.0
    %v304 = vsel %vm303, 1, 0
    %v305 = vmul.u32 %v304, 2
    %306 = vrot.lane.b32.xlu0 %v305, 64
    %v307 = vpop.permute.xlu0 %306
    %v308 = vadd.s32 %v304, %v307
    %vm309 = vcmp.eq.s32.totalorder %v308, 0
    %v310 = vsel %vm309, %v217, 0.0
    %v311 = vadd.f32 %v310, 0.0
    %vm312 = vcmp.eq.s32.totalorder %v308, 1
    %314 = vrot.lane.b32.xlu0 %v217, 64
    %v315 = vpop.permute.xlu0 %314
    %v317 = vsel %vm312, %v315, 0.0
    %v318 = vadd.f32 %v311, %v317
    %vm319 = vcmp.eq.s32.totalorder %v308, 2
    %v320 = vsel %vm319, %v219, 0.0
    %v321 = vadd.f32 %v318, %v320
    %vm322 = vcmp.eq.s32.totalorder %v308, 3
    %324 = vrot.lane.b32.xlu0 %v219, 64
    %v325 = vpop.permute.xlu0 %324
    %v327 = vsel %vm322, %v325, 0.0
    %v328 = vadd.f32 %v321, %v327
    %v329 = vxor.u32 %v328, 2147483648
    %v330 = vmul.f32 %v329, 1.442695
    %v331 = vpow.pop %v330
    %v332 = vadd.f32 %v331, 1.0
    %v333 = vrcp.pop %v332
    %v334 = vmul.f32 1.0, %v333
    %v335 = vmax.f32 %v334, 0.001
    %v336 = vmin.f32 %v335, 0.999
    %v337 = vsub.f32 1.0, %v336
    %v338 = vrcp.pop %v337
    %v339 = vmul.f32 %v336, %v338
    %v340 = vlog2.pop %v339
    %v341 = vmul.f32 %v340, 0.6931472
    %v342 = vld [vmem:[%s7] sm:$0xff]
    %v343 = vld [vmem:[%s7 + $0x8] sm:$0xff]
    %v344 = vld [vmem:[%s7 + $0x10] sm:$0xff]
    %v345 = vld [vmem:[%s7 + $0x18] sm:$0xff]
    %v346 = vld [vmem:[%s7 + $0x20] sm:$0xff]
    %v347 = vld [vmem:[%s7 + $0x28] sm:$0xff]
    %v348 = vld [vmem:[%s7 + $0x30] sm:$0xff]
    %v349 = vld [vmem:[%s7 + $0x38] sm:$0xff]
    %v350 = vld [vmem:[%s8] sm:$0x1]
    %v351 = vmul.f32 %v350, 6.906755
    %v353 = vlaneseq
    %v354 = vshrl.u32 %v353, 7
    %v355 = vsub.s32 0, %v354
    %v356 = vrot.slane %v351, %v355
    %vm358 = vcmask 523264
    %v360 = vsel %vm358, %v341, 0
    %362 = vmatprep.subr.mxu0 0.0
    %363 = vmatpush1.msra.mxu0 0.0
    %364 = vmatprep.subr.mxu0 0.0
    %365 = vmatpush1.msra.mxu0 0.0
    %366 = vmatprep.subr.mxu0 0.0
    %367 = vmatpush1.msra.mxu0 0.0
    %368 = vmatprep.subr.mxu0 0.0
    %369 = vmatpush1.msra.mxu0 0.0
    %370 = vmatprep.subr.mxu0 0.0
    %371 = vmatpush1.msra.mxu0 0.0
    %372 = vmatprep.subr.mxu0 0.0
    %373 = vmatpush1.msra.mxu0 0.0
    %374 = vmatprep.subr.mxu0 0.0
    %375 = vmatpush1.msra.mxu0 0.0
    %376 = vmatprep.subr.mxu0 0.0
    %377 = vmatpush1.msra.mxu0 0.0
    %378 = vmatprep.subr.mxu0 0.0
    %379 = vmatpush1.msra.mxu0 %v349
    %380 = vmatprep.subr.mxu0 0.0
    %381 = vmatpush1.msra.mxu0 %v348
    %382 = vmatprep.subr.mxu0 0.0
    %383 = vmatpush1.msra.mxu0 %v347
    %384 = vmatprep.subr.mxu0 0.0
    %385 = vmatpush1.msra.mxu0 %v346
    %386 = vmatprep.subr.mxu0 0.0
    %387 = vmatpush1.msra.mxu0 %v345
    %388 = vmatprep.subr.mxu0 0.0
    %389 = vmatpush1.msra.mxu0 %v344
    %390 = vmatprep.subr.mxu0 0.0
    %391 = vmatpush1.msra.mxu0 %v343
    %392 = vmatprep.subr.mxu0 0.0
    %393 = vmatpush1.msra.mxu0 %v342
    %394 = vmatprep.subr.mxu0 0.0
    %395 = vmatpush2.msra.mxu0 0.0
    %396 = vmatprep.subr.mxu0 0.0
    %397 = vmatpush2.msra.mxu0 0.0
    %398 = vmatprep.subr.mxu0 0.0
    %399 = vmatpush2.msra.mxu0 0.0
    %400 = vmatprep.subr.mxu0 0.0
    %401 = vmatpush2.msra.mxu0 0.0
    %402 = vmatprep.subr.mxu0 0.0
    %403 = vmatpush2.msra.mxu0 0.0
    %404 = vmatprep.subr.mxu0 0.0
    %405 = vmatpush2.msra.mxu0 0.0
    %406 = vmatprep.subr.mxu0 0.0
    %407 = vmatpush2.msra.mxu0 0.0
    %408 = vmatprep.subr.mxu0 0.0
    %409 = vmatpush2.msra.mxu0 0.0
    %410 = vmatprep.subr.mxu0 0.0
    %411 = vmatpush2.msra.mxu0 0.0
    %412 = vmatprep.subr.mxu0 0.0
    %413 = vmatpush2.msra.mxu0 0.0
    %414 = vmatprep.subr.mxu0 0.0
    %415 = vmatpush2.msra.mxu0 0.0
    %416 = vmatprep.subr.mxu0 0.0
    %417 = vmatpush2.msra.mxu0 0.0
    %418 = vmatprep.subr.mxu0 0.0
    %419 = vmatpush2.msra.mxu0 0.0
    %420 = vmatprep.subr.mxu0 0.0
    %421 = vmatpush2.msra.mxu0 0.0
    %422 = vmatprep.subr.mxu0 0.0
    %423 = vmatpush2.msra.mxu0 0.0
    %424 = vmatprep.subr.mxu0 0.0
    %425 = vmatpush2.msra.mxu0 0.0
    %426 = vmatprep.mubr.f32.mxu0 0.0
    %427 = vmatmul.mubr.f32.gmra.mxu0 %v360
    %v428 = vpop.f32.mrf.mxu0
    %v429 = vadd.f32 %v356, %v428
    %v430 = vpop.f32.mrf.mxu0
    %431 = vdwg.mxu0
    %v432 = vld [vmem:[%s5] sm:$0xff]
    %v433 = vld [vmem:[%s5 + $0x8] sm:$0xff]
    %v434 = vld [vmem:[#allocation7] sm:$0x1]
    %v436 = vlaneseq
    %v437 = vshrl.u32 %v436, 7
    %v438 = vsub.s32 0, %v437
    %v439 = vrot.slane %v434, %v438
    %441 = vmatprep.subr.mxu0 0.0
    %442 = vmatpush1.msra.mxu0 0.0
    %443 = vmatprep.subr.mxu0 0.0
    %444 = vmatpush1.msra.mxu0 0.0
    %445 = vmatprep.subr.mxu0 0.0
    %446 = vmatpush1.msra.mxu0 0.0
    %447 = vmatprep.subr.mxu0 0.0
    %448 = vmatpush1.msra.mxu0 0.0
    %449 = vmatprep.subr.mxu0 0.0
    %450 = vmatpush1.msra.mxu0 0.0
    %451 = vmatprep.subr.mxu0 0.0
    %452 = vmatpush1.msra.mxu0 0.0
    %453 = vmatprep.subr.mxu0 0.0
    %454 = vmatpush1.msra.mxu0 0.0
    %455 = vmatprep.subr.mxu0 0.0
    %456 = vmatpush1.msra.mxu0 0.0
    %457 = vmatprep.subr.mxu0 0.0
    %458 = vmatpush1.msra.mxu0 0.0
    %459 = vmatprep.subr.mxu0 0.0
    %460 = vmatpush1.msra.mxu0 0.0
    %461 = vmatprep.subr.mxu0 0.0
    %462 = vmatpush1.msra.mxu0 0.0
    %463 = vmatprep.subr.mxu0 0.0
    %464 = vmatpush1.msra.mxu0 0.0
    %465 = vmatprep.subr.mxu0 0.0
    %466 = vmatpush1.msra.mxu0 0.0
    %467 = vmatprep.subr.mxu0 0.0
    %468 = vmatpush1.msra.mxu0 0.0
    %469 = vmatprep.subr.mxu0 0.0
    %470 = vmatpush1.msra.mxu0 %v433
    %471 = vmatprep.subr.mxu0 0.0
    %472 = vmatpush1.msra.mxu0 %v432
    %473 = vmatprep.subr.mxu0 0.0
    %474 = vmatpush2.msra.mxu0 0.0
    %475 = vmatprep.subr.mxu0 0.0
    %476 = vmatpush2.msra.mxu0 0.0
    %477 = vmatprep.subr.mxu0 0.0
    %478 = vmatpush2.msra.mxu0 0.0
    %479 = vmatprep.subr.mxu0 0.0
    %480 = vmatpush2.msra.mxu0 0.0
    %481 = vmatprep.subr.mxu0 0.0
    %482 = vmatpush2.msra.mxu0 0.0
    %483 = vmatprep.subr.mxu0 0.0
    %484 = vmatpush2.msra.mxu0 0.0
    %485 = vmatprep.subr.mxu0 0.0
    %486 = vmatpush2.msra.mxu0 0.0
    %487 = vmatprep.subr.mxu0 0.0
    %488 = vmatpush2.msra.mxu0 0.0
    %489 = vmatprep.subr.mxu0 0.0
    %490 = vmatpush2.msra.mxu0 0.0
    %491 = vmatprep.subr.mxu0 0.0
    %492 = vmatpush2.msra.mxu0 0.0
    %493 = vmatprep.subr.mxu0 0.0
    %494 = vmatpush2.msra.mxu0 0.0
    %495 = vmatprep.subr.mxu0 0.0
    %496 = vmatpush2.msra.mxu0 0.0
    %497 = vmatprep.subr.mxu0 0.0
    %498 = vmatpush2.msra.mxu0 0.0
    %499 = vmatprep.subr.mxu0 0.0
    %500 = vmatpush2.msra.mxu0 0.0
    %501 = vmatprep.subr.mxu0 0.0
    %502 = vmatpush2.msra.mxu0 0.0
    %503 = vmatprep.subr.mxu0 0.0
    %504 = vmatpush2.msra.mxu0 0.0
    %505 = vmatprep.mubr.f32.mxu0 0.0
    %506 = vmatmul.mubr.f32.gmra.mxu0 %v231
    %v507 = vpop.f32.mrf.mxu0
    %v508 = vadd.f32 %v439, %v507
    %v509 = vpop.f32.mrf.mxu0
    %510 = vdwg.mxu0
    %vm511 = vcmp.gt.f32.partialorder %v508, 0.0
    %v512 = vsel %vm511, 1, 0
    %v513 = vmul.u32 %v512, 2
    %514 = vrot.lane.b32.xlu0 %v513, 124
    %v515 = vpop.permute.xlu0 %514
    %v516 = vadd.s32 %v512, %v515
    %vm517 = vcmp.eq.s32.totalorder %v516, 0
    %v518 = vsel %vm517, %v429, 0.0
    %v519 = vadd.f32 %v518, 0.0
    %vm520 = vcmp.eq.s32.totalorder %v516, 1
    %522 = vrot.lane.b32.xlu0 %v429, 124
    %v523 = vpop.permute.xlu0 %522
    %v525 = vsel %vm520, %v523, 0.0
    %v526 = vadd.f32 %v519, %v525
    %vm527 = vcmp.eq.s32.totalorder %v516, 2
    %528 = vrot.lane.b32.xlu0 %v429, 120
    %v529 = vpop.permute.xlu0 %528
    %v531 = vsel %vm527, %v529, 0.0
    %v532 = vadd.f32 %v526, %v531
    %vm533 = vcmp.eq.s32.totalorder %v516, 3
    %534 = vrot.lane.b32.xlu0 %v429, 116
    %v535 = vpop.permute.xlu0 %534
    %v537 = vsel %vm533, %v535, 0.0
    %v538 = vadd.f32 %v532, %v537
    %v539 = vxor.u32 %v538, 2147483648
    %v540 = vmul.f32 %v539, 1.442695
    %v541 = vpow.pop %v540
    %v542 = vadd.f32 %v541, 1.0
    %v543 = vrcp.pop %v542
    %v544 = vmul.f32 1.0, %v543
    %v545 = vmax.f32 %v544, 0.001
    %v546 = vmin.f32 %v545, 0.999
    %v547 = vld [vmem:[#allocation8] sm:$0xf]
    %v548 = vld [vmem:[#allocation10] sm:$0x1]
    %v550 = vlaneseq
    %v551 = vshrl.u32 %v550, 7
    %v552 = vsub.s32 0, %v551
    %v553 = vrot.slane %v548, %v552
    %vm555 = vcmask 31744
    %v557 = vsel %vm555, %v546, 0
    %vm559 = vcmask 1043456
    %v561 = vsel %vm559, %v547, 0
    %563 = vmatprep.subr.mxu0 0.0
    %564 = vmatpush1.msra.mxu0 0.0
    %565 = vmatprep.subr.mxu0 0.0
    %566 = vmatpush1.msra.mxu0 0.0
    %567 = vmatprep.subr.mxu0 0.0
    %568 = vmatpush1.msra.mxu0 0.0
    %569 = vmatprep.subr.mxu0 0.0
    %570 = vmatpush1.msra.mxu0 0.0
    %571 = vmatprep.subr.mxu0 0.0
    %572 = vmatpush1.msra.mxu0 0.0
    %573 = vmatprep.subr.mxu0 0.0
    %574 = vmatpush1.msra.mxu0 0.0
    %575 = vmatprep.subr.mxu0 0.0
    %576 = vmatpush1.msra.mxu0 0.0
    %577 = vmatprep.subr.mxu0 0.0
    %578 = vmatpush1.msra.mxu0 0.0
    %579 = vmatprep.subr.mxu0 0.0
    %580 = vmatpush1.msra.mxu0 0.0
    %581 = vmatprep.subr.mxu0 0.0
    %582 = vmatpush1.msra.mxu0 0.0
    %583 = vmatprep.subr.mxu0 0.0
    %584 = vmatpush1.msra.mxu0 0.0
    %585 = vmatprep.subr.mxu0 0.0
    %586 = vmatpush1.msra.mxu0 0.0
    %587 = vmatprep.subr.mxu0 0.0
    %588 = vmatpush1.msra.mxu0 0.0
    %589 = vmatprep.subr.mxu0 0.0
    %590 = vmatpush1.msra.mxu0 0.0
    %591 = vmatprep.subr.mxu0 0.0
    %592 = vmatpush1.msra.mxu0 0.0
    %593 = vmatprep.subr.mxu0 0.0
    %594 = vmatpush1.msra.mxu0 %v561
    %595 = vmatprep.subr.mxu0 0.0
    %596 = vmatpush2.msra.mxu0 0.0
    %597 = vmatprep.subr.mxu0 0.0
    %598 = vmatpush2.msra.mxu0 0.0
    %599 = vmatprep.subr.mxu0 0.0
    %600 = vmatpush2.msra.mxu0 0.0
    %601 = vmatprep.subr.mxu0 0.0
    %602 = vmatpush2.msra.mxu0 0.0
    %603 = vmatprep.subr.mxu0 0.0
    %604 = vmatpush2.msra.mxu0 0.0
    %605 = vmatprep.subr.mxu0 0.0
    %606 = vmatpush2.msra.mxu0 0.0
    %607 = vmatprep.subr.mxu0 0.0
    %608 = vmatpush2.msra.mxu0 0.0
    %609 = vmatprep.subr.mxu0 0.0
    %610 = vmatpush2.msra.mxu0 0.0
    %611 = vmatprep.subr.mxu0 0.0
    %612 = vmatpush2.msra.mxu0 0.0
    %613 = vmatprep.subr.mxu0 0.0
    %614 = vmatpush2.msra.mxu0 0.0
    %615 = vmatprep.subr.mxu0 0.0
    %616 = vmatpush2.msra.mxu0 0.0
    %617 = vmatprep.subr.mxu0 0.0
    %618 = vmatpush2.msra.mxu0 0.0
    %619 = vmatprep.subr.mxu0 0.0
    %620 = vmatpush2.msra.mxu0 0.0
    %621 = vmatprep.subr.mxu0 0.0
    %622 = vmatpush2.msra.mxu0 0.0
    %623 = vmatprep.subr.mxu0 0.0
    %624 = vmatpush2.msra.mxu0 0.0
    %625 = vmatprep.subr.mxu0 0.0
    %626 = vmatpush2.msra.mxu0 0.0
    %627 = vmatprep.mubr.f32.mxu0 0.0
    %628 = vmatmul.mubr.f32.gmra.mxu0 %v557
    %v629 = vpop.f32.mrf.mxu0
    %v630 = vadd.f32 %v553, %v629
    %v631 = vpop.f32.mrf.mxu0
    %632 = vdwg.mxu0
    %v633 = vld [vmem:[%s11] sm:$0xff]
    %v634 = vld [vmem:[%s11 + $0x8] sm:$0xff]
    %v635 = vld [vmem:[#allocation11] sm:$0x1]
    %v637 = vlaneseq
    %v638 = vshrl.u32 %v637, 7
    %v639 = vsub.s32 0, %v638
    %v640 = vrot.slane %v635, %v639
    %642 = vmatprep.subr.mxu0 0.0
    %643 = vmatpush1.msra.mxu0 0.0
    %644 = vmatprep.subr.mxu0 0.0
    %645 = vmatpush1.msra.mxu0 0.0
    %646 = vmatprep.subr.mxu0 0.0
    %647 = vmatpush1.msra.mxu0 0.0
    %648 = vmatprep.subr.mxu0 0.0
    %649 = vmatpush1.msra.mxu0 0.0
    %650 = vmatprep.subr.mxu0 0.0
    %651 = vmatpush1.msra.mxu0 0.0
    %652 = vmatprep.subr.mxu0 0.0
    %653 = vmatpush1.msra.mxu0 0.0
    %654 = vmatprep.subr.mxu0 0.0
    %655 = vmatpush1.msra.mxu0 0.0
    %656 = vmatprep.subr.mxu0 0.0
    %657 = vmatpush1.msra.mxu0 0.0
    %658 = vmatprep.subr.mxu0 0.0
    %659 = vmatpush1.msra.mxu0 0.0
    %660 = vmatprep.subr.mxu0 0.0
    %661 = vmatpush1.msra.mxu0 0.0
    %662 = vmatprep.subr.mxu0 0.0
    %663 = vmatpush1.msra.mxu0 0.0
    %664 = vmatprep.subr.mxu0 0.0
    %665 = vmatpush1.msra.mxu0 0.0
    %666 = vmatprep.subr.mxu0 0.0
    %667 = vmatpush1.msra.mxu0 0.0
    %668 = vmatprep.subr.mxu0 0.0
    %669 = vmatpush1.msra.mxu0 0.0
    %670 = vmatprep.subr.mxu0 0.0
    %671 = vmatpush1.msra.mxu0 %v634
    %672 = vmatprep.subr.mxu0 0.0
    %673 = vmatpush1.msra.mxu0 %v633
    %674 = vmatprep.subr.mxu0 0.0
    %675 = vmatpush2.msra.mxu0 0.0
    %676 = vmatprep.subr.mxu0 0.0
    %677 = vmatpush2.msra.mxu0 0.0
    %678 = vmatprep.subr.mxu0 0.0
    %679 = vmatpush2.msra.mxu0 0.0
    %680 = vmatprep.subr.mxu0 0.0
    %681 = vmatpush2.msra.mxu0 0.0
    %682 = vmatprep.subr.mxu0 0.0
    %683 = vmatpush2.msra.mxu0 0.0
    %684 = vmatprep.subr.mxu0 0.0
    %685 = vmatpush2.msra.mxu0 0.0
    %686 = vmatprep.subr.mxu0 0.0
    %687 = vmatpush2.msra.mxu0 0.0
    %688 = vmatprep.subr.mxu0 0.0
    %689 = vmatpush2.msra.mxu0 0.0
    %690 = vmatprep.subr.mxu0 0.0
    %691 = vmatpush2.msra.mxu0 0.0
    %692 = vmatprep.subr.mxu0 0.0
    %693 = vmatpush2.msra.mxu0 0.0
    %694 = vmatprep.subr.mxu0 0.0
    %695 = vmatpush2.msra.mxu0 0.0
    %696 = vmatprep.subr.mxu0 0.0
    %697 = vmatpush2.msra.mxu0 0.0
    %698 = vmatprep.subr.mxu0 0.0
    %699 = vmatpush2.msra.mxu0 0.0
    %700 = vmatprep.subr.mxu0 0.0
    %701 = vmatpush2.msra.mxu0 0.0
    %702 = vmatprep.subr.mxu0 0.0
    %703 = vmatpush2.msra.mxu0 0.0
    %704 = vmatprep.subr.mxu0 0.0
    %705 = vmatpush2.msra.mxu0 0.0
    %706 = vmatprep.mubr.f32.mxu0 0.0
    %707 = vmatmul.mubr.f32.gmra.mxu0 %v231
    %v708 = vpop.f32.mrf.mxu0
    %v709 = vadd.f32 %v640, %v708
    %v710 = vpop.f32.mrf.mxu0
    %711 = vdwg.mxu0
    %v712 = vxor.u32 %v709, 2147483648
    %v713 = vmul.f32 %v712, 1.442695
    %v714 = vpow.pop %v713
    %v715 = vadd.f32 %v714, 1.0
    %v716 = vrcp.pop %v715
    %v717 = vmul.f32 1.0, %v716
    %v718 = vmul.f32 %v630, %v717
    %v719 = vld [vmem:[%s13] sm:$0xff]
    %v720 = vld [vmem:[%s13 + $0x8] sm:$0xff]
    %v721 = vld [vmem:[%s13 + $0x10] sm:$0xff]
    %v722 = vld [vmem:[%s13 + $0x18] sm:$0xff]
    %v723 = vmax.f32 %v718, 0.0
    %vm724 = vcmask 253952
    %725 = vst.msk [vmem:[#allocation13] sm:$0x1] %vm724, %v723
    %vm726 = vcmask 261120
    %v728 = vsel %vm726, %v723, 0
    %730 = vmatprep.subr.mxu0 0.0
    %731 = vmatpush1.msra.mxu0 0.0
    %732 = vmatprep.subr.mxu0 0.0
    %733 = vmatpush1.msra.mxu0 0.0
    %734 = vmatprep.subr.mxu0 0.0
    %735 = vmatpush1.msra.mxu0 0.0
    %736 = vmatprep.subr.mxu0 0.0
    %737 = vmatpush1.msra.mxu0 0.0
    %738 = vmatprep.subr.mxu0 0.0
    %739 = vmatpush1.msra.mxu0 0.0
    %740 = vmatprep.subr.mxu0 0.0
    %741 = vmatpush1.msra.mxu0 0.0
    %742 = vmatprep.subr.mxu0 0.0
    %743 = vmatpush1.msra.mxu0 0.0
    %744 = vmatprep.subr.mxu0 0.0
    %745 = vmatpush1.msra.mxu0 0.0
    %746 = vmatprep.subr.mxu0 0.0
    %747 = vmatpush1.msra.mxu0 0.0
    %748 = vmatprep.subr.mxu0 0.0
    %749 = vmatpush1.msra.mxu0 0.0
    %750 = vmatprep.subr.mxu0 0.0
    %751 = vmatpush1.msra.mxu0 0.0
    %752 = vmatprep.subr.mxu0 0.0
    %753 = vmatpush1.msra.mxu0 0.0
    %754 = vmatprep.subr.mxu0 0.0
    %755 = vmatpush1.msra.mxu0 %v722
    %756 = vmatprep.subr.mxu0 0.0
    %757 = vmatpush1.msra.mxu0 %v721
    %758 = vmatprep.subr.mxu0 0.0
    %759 = vmatpush1.msra.mxu0 %v720
    %760 = vmatprep.subr.mxu0 0.0
    %761 = vmatpush1.msra.mxu0 %v719
    %762 = vmatprep.subr.mxu0 0.0
    %763 = vmatpush2.msra.mxu0 0.0
    %764 = vmatprep.subr.mxu0 0.0
    %765 = vmatpush2.msra.mxu0 0.0
    %766 = vmatprep.subr.mxu0 0.0
    %767 = vmatpush2.msra.mxu0 0.0
    %768 = vmatprep.subr.mxu0 0.0
    %769 = vmatpush2.msra.mxu0 0.0
    %770 = vmatprep.subr.mxu0 0.0
    %771 = vmatpush2.msra.mxu0 0.0
    %772 = vmatprep.subr.mxu0 0.0
    %773 = vmatpush2.msra.mxu0 0.0
    %774 = vmatprep.subr.mxu0 0.0
    %775 = vmatpush2.msra.mxu0 0.0
    %776 = vmatprep.subr.mxu0 0.0
    %777 = vmatpush2.msra.mxu0 0.0
    %778 = vmatprep.subr.mxu0 0.0
    %779 = vmatpush2.msra.mxu0 0.0
    %780 = vmatprep.subr.mxu0 0.0
    %781 = vmatpush2.msra.mxu0 0.0
    %782 = vmatprep.subr.mxu0 0.0
    %783 = vmatpush2.msra.mxu0 0.0
    %784 = vmatprep.subr.mxu0 0.0
    %785 = vmatpush2.msra.mxu0 0.0
    %786 = vmatprep.subr.mxu0 0.0
    %787 = vmatpush2.msra.mxu0 0.0
    %788 = vmatprep.subr.mxu0 0.0
    %789 = vmatpush2.msra.mxu0 0.0
    %790 = vmatprep.subr.mxu0 0.0
    %791 = vmatpush2.msra.mxu0 0.0
    %792 = vmatprep.subr.mxu0 0.0
    %793 = vmatpush2.msra.mxu0 0.0
    %794 = vmatprep.mubr.f32.mxu0 0.0
    %795 = vmatmul.mubr.f32.gmra.mxu0 %v728
    %v796 = vpop.f32.mrf.mxu0
    %v797 = vadd.f32 0.0, %v796
    %v798 = vpop.f32.mrf.mxu0
    %799 = vdwg.mxu0
    %v801 = vrot.slane %v797, 7
    %v803 = vadd.f32 %v718, %v801
    %v804 = vmax.f32 %v803, 0.0
    %vm805 = vcmask 254977
    %806 = vst.msk [vmem:[#allocation13] sm:$0x2] %vm805, %v804
    %v808 = vrot.slane %v804, 1
    %v809 = vsel %vm726, %v808, 0
    %811 = vmatprep.subr.mxu0 0.0
    %812 = vmatpush1.msra.mxu0 0.0
    %813 = vmatprep.subr.mxu0 0.0
    %814 = vmatpush1.msra.mxu0 0.0
    %815 = vmatprep.subr.mxu0 0.0
    %816 = vmatpush1.msra.mxu0 0.0
    %817 = vmatprep.subr.mxu0 0.0
    %818 = vmatpush1.msra.mxu0 0.0
    %819 = vmatprep.subr.mxu0 0.0
    %820 = vmatpush1.msra.mxu0 0.0
    %821 = vmatprep.subr.mxu0 0.0
    %822 = vmatpush1.msra.mxu0 0.0
    %823 = vmatprep.subr.mxu0 0.0
    %824 = vmatpush1.msra.mxu0 0.0
    %825 = vmatprep.subr.mxu0 0.0
    %826 = vmatpush1.msra.mxu0 0.0
    %827 = vmatprep.subr.mxu0 0.0
    %828 = vmatpush1.msra.mxu0 0.0
    %829 = vmatprep.subr.mxu0 0.0
    %830 = vmatpush1.msra.mxu0 0.0
    %831 = vmatprep.subr.mxu0 0.0
    %832 = vmatpush1.msra.mxu0 0.0
    %833 = vmatprep.subr.mxu0 0.0
    %834 = vmatpush1.msra.mxu0 0.0
    %835 = vmatprep.subr.mxu0 0.0
    %836 = vmatpush1.msra.mxu0 %v722
    %837 = vmatprep.subr.mxu0 0.0
    %838 = vmatpush1.msra.mxu0 %v721
    %839 = vmatprep.subr.mxu0 0.0
    %840 = vmatpush1.msra.mxu0 %v720
    %841 = vmatprep.subr.mxu0 0.0
    %842 = vmatpush1.msra.mxu0 %v719
    %843 = vmatprep.subr.mxu0 0.0
    %844 = vmatpush2.msra.mxu0 0.0
    %845 = vmatprep.subr.mxu0 0.0
    %846 = vmatpush2.msra.mxu0 0.0
    %847 = vmatprep.subr.mxu0 0.0
    %848 = vmatpush2.msra.mxu0 0.0
    %849 = vmatprep.subr.mxu0 0.0
    %850 = vmatpush2.msra.mxu0 0.0
    %851 = vmatprep.subr.mxu0 0.0
    %852 = vmatpush2.msra.mxu0 0.0
    %853 = vmatprep.subr.mxu0 0.0
    %854 = vmatpush2.msra.mxu0 0.0
    %855 = vmatprep.subr.mxu0 0.0
    %856 = vmatpush2.msra.mxu0 0.0
    %857 = vmatprep.subr.mxu0 0.0
    %858 = vmatpush2.msra.mxu0 0.0
    %859 = vmatprep.subr.mxu0 0.0
    %860 = vmatpush2.msra.mxu0 0.0
    %861 = vmatprep.subr.mxu0 0.0
    %862 = vmatpush2.msra.mxu0 0.0
    %863 = vmatprep.subr.mxu0 0.0
    %864 = vmatpush2.msra.mxu0 0.0
    %865 = vmatprep.subr.mxu0 0.0
    %866 = vmatpush2.msra.mxu0 0.0
    %867 = vmatprep.subr.mxu0 0.0
    %868 = vmatpush2.msra.mxu0 0.0
    %869 = vmatprep.subr.mxu0 0.0
    %870 = vmatpush2.msra.mxu0 0.0
    %871 = vmatprep.subr.mxu0 0.0
    %872 = vmatpush2.msra.mxu0 0.0
    %873 = vmatprep.subr.mxu0 0.0
    %874 = vmatpush2.msra.mxu0 0.0
    %875 = vmatprep.mubr.f32.mxu0 0.0
    %876 = vmatmul.mubr.f32.gmra.mxu0 %v809
    %v877 = vpop.f32.mrf.mxu0
    %v878 = vadd.f32 0.0, %v877
    %v879 = vpop.f32.mrf.mxu0
    %880 = vdwg.mxu0
    %v882 = vrot.slane %v878, 6
    %v884 = vadd.f32 %v718, %v882
    %v885 = vmax.f32 %v884, 0.0
    %vm886 = vcmask 256002
    %887 = vst.msk [vmem:[#allocation13] sm:$0x4] %vm886, %v885
    %v889 = vrot.slane %v885, 2
    %v890 = vsel %vm726, %v889, 0
    %892 = vmatprep.subr.mxu0 0.0
    %893 = vmatpush1.msra.mxu0 0.0
    %894 = vmatprep.subr.mxu0 0.0
    %895 = vmatpush1.msra.mxu0 0.0
    %896 = vmatprep.subr.mxu0 0.0
    %897 = vmatpush1.msra.mxu0 0.0
    %898 = vmatprep.subr.mxu0 0.0
    %899 = vmatpush1.msra.mxu0 0.0
    %900 = vmatprep.subr.mxu0 0.0
    %901 = vmatpush1.msra.mxu0 0.0
    %902 = vmatprep.subr.mxu0 0.0
    %903 = vmatpush1.msra.mxu0 0.0
    %904 = vmatprep.subr.mxu0 0.0
    %905 = vmatpush1.msra.mxu0 0.0
    %906 = vmatprep.subr.mxu0 0.0
    %907 = vmatpush1.msra.mxu0 0.0
    %908 = vmatprep.subr.mxu0 0.0
    %909 = vmatpush1.msra.mxu0 0.0
    %910 = vmatprep.subr.mxu0 0.0
    %911 = vmatpush1.msra.mxu0 0.0
    %912 = vmatprep.subr.mxu0 0.0
    %913 = vmatpush1.msra.mxu0 0.0
    %914 = vmatprep.subr.mxu0 0.0
    %915 = vmatpush1.msra.mxu0 0.0
    %916 = vmatprep.subr.mxu0 0.0
    %917 = vmatpush1.msra.mxu0 %v722
    %918 = vmatprep.subr.mxu0 0.0
    %919 = vmatpush1.msra.mxu0 %v721
    %920 = vmatprep.subr.mxu0 0.0
    %921 = vmatpush1.msra.mxu0 %v720
    %922 = vmatprep.subr.mxu0 0.0
    %923 = vmatpush1.msra.mxu0 %v719
    %924 = vmatprep.subr.mxu0 0.0
    %925 = vmatpush2.msra.mxu0 0.0
    %926 = vmatprep.subr.mxu0 0.0
    %927 = vmatpush2.msra.mxu0 0.0
    %928 = vmatprep.subr.mxu0 0.0
    %929 = vmatpush2.msra.mxu0 0.0
    %930 = vmatprep.subr.mxu0 0.0
    %931 = vmatpush2.msra.mxu0 0.0
    %932 = vmatprep.subr.mxu0 0.0
    %933 = vmatpush2.msra.mxu0 0.0
    %934 = vmatprep.subr.mxu0 0.0
    %935 = vmatpush2.msra.mxu0 0.0
    %936 = vmatprep.subr.mxu0 0.0
    %937 = vmatpush2.msra.mxu0 0.0
    %938 = vmatprep.subr.mxu0 0.0
    %939 = vmatpush2.msra.mxu0 0.0
    %940 = vmatprep.subr.mxu0 0.0
    %941 = vmatpush2.msra.mxu0 0.0
    %942 = vmatprep.subr.mxu0 0.0
    %943 = vmatpush2.msra.mxu0 0.0
    %944 = vmatprep.subr.mxu0 0.0
    %945 = vmatpush2.msra.mxu0 0.0
    %946 = vmatprep.subr.mxu0 0.0
    %947 = vmatpush2.msra.mxu0 0.0
    %948 = vmatprep.subr.mxu0 0.0
    %949 = vmatpush2.msra.mxu0 0.0
    %950 = vmatprep.subr.mxu0 0.0
    %951 = vmatpush2.msra.mxu0 0.0
    %952 = vmatprep.subr.mxu0 0.0
    %953 = vmatpush2.msra.mxu0 0.0
    %954 = vmatprep.subr.mxu0 0.0
    %955 = vmatpush2.msra.mxu0 0.0
    %956 = vmatprep.mubr.f32.mxu0 0.0
    %957 = vmatmul.mubr.f32.gmra.mxu0 %v890
    %v958 = vpop.f32.mrf.mxu0
    %v959 = vadd.f32 0.0, %v958
    %v960 = vpop.f32.mrf.mxu0
    %961 = vdwg.mxu0
    %v963 = vrot.slane %v959, 5
    %v965 = vadd.f32 %v718, %v963
    %v966 = vmax.f32 %v965, 0.0
    %vm967 = vcmask 257027
    %968 = vst.msk [vmem:[#allocation13] sm:$0x8] %vm967, %v966
    %v970 = vrot.slane %v966, 3
    %v971 = vsel %vm726, %v970, 0
    %973 = vmatprep.subr.mxu0 0.0
    %974 = vmatpush1.msra.mxu0 0.0
    %975 = vmatprep.subr.mxu0 0.0
    %976 = vmatpush1.msra.mxu0 0.0
    %977 = vmatprep.subr.mxu0 0.0
    %978 = vmatpush1.msra.mxu0 0.0
    %979 = vmatprep.subr.mxu0 0.0
    %980 = vmatpush1.msra.mxu0 0.0
    %981 = vmatprep.subr.mxu0 0.0
    %982 = vmatpush1.msra.mxu0 0.0
    %983 = vmatprep.subr.mxu0 0.0
    %984 = vmatpush1.msra.mxu0 0.0
    %985 = vmatprep.subr.mxu0 0.0
    %986 = vmatpush1.msra.mxu0 0.0
    %987 = vmatprep.subr.mxu0 0.0
    %988 = vmatpush1.msra.mxu0 0.0
    %989 = vmatprep.subr.mxu0 0.0
    %990 = vmatpush1.msra.mxu0 0.0
    %991 = vmatprep.subr.mxu0 0.0
    %992 = vmatpush1.msra.mxu0 0.0
    %993 = vmatprep.subr.mxu0 0.0
    %994 = vmatpush1.msra.mxu0 0.0
    %995 = vmatprep.subr.mxu0 0.0
    %996 = vmatpush1.msra.mxu0 0.0
    %997 = vmatprep.subr.mxu0 0.0
    %998 = vmatpush1.msra.mxu0 %v722
    %999 = vmatprep.subr.mxu0 0.0
    %1000 = vmatpush1.msra.mxu0 %v721
    %1001 = vmatprep.subr.mxu0 0.0
    %1002 = vmatpush1.msra.mxu0 %v720
    %1003 = vmatprep.subr.mxu0 0.0
    %1004 = vmatpush1.msra.mxu0 %v719
    %1005 = vmatprep.subr.mxu0 0.0
    %1006 = vmatpush2.msra.mxu0 0.0
    %1007 = vmatprep.subr.mxu0 0.0
    %1008 = vmatpush2.msra.mxu0 0.0
    %1009 = vmatprep.subr.mxu0 0.0
    %1010 = vmatpush2.msra.mxu0 0.0
    %1011 = vmatprep.subr.mxu0 0.0
    %1012 = vmatpush2.msra.mxu0 0.0
    %1013 = vmatprep.subr.mxu0 0.0
    %1014 = vmatpush2.msra.mxu0 0.0
    %1015 = vmatprep.subr.mxu0 0.0
    %1016 = vmatpush2.msra.mxu0 0.0
    %1017 = vmatprep.subr.mxu0 0.0
    %1018 = vmatpush2.msra.mxu0 0.0
    %1019 = vmatprep.subr.mxu0 0.0
    %1020 = vmatpush2.msra.mxu0 0.0
    %1021 = vmatprep.subr.mxu0 0.0
    %1022 = vmatpush2.msra.mxu0 0.0
    %1023 = vmatprep.subr.mxu0 0.0
    %1024 = vmatpush2.msra.mxu0 0.0
    %1025 = vmatprep.subr.mxu0 0.0
    %1026 = vmatpush2.msra.mxu0 0.0
    %1027 = vmatprep.subr.mxu0 0.0
    %1028 = vmatpush2.msra.mxu0 0.0
    %1029 = vmatprep.subr.mxu0 0.0
    %1030 = vmatpush2.msra.mxu0 0.0
    %1031 = vmatprep.subr.mxu0 0.0
    %1032 = vmatpush2.msra.mxu0 0.0
    %1033 = vmatprep.subr.mxu0 0.0
    %1034 = vmatpush2.msra.mxu0 0.0
    %1035 = vmatprep.subr.mxu0 0.0
    %1036 = vmatpush2.msra.mxu0 0.0
    %1037 = vmatprep.mubr.f32.mxu0 0.0
    %1038 = vmatmul.mubr.f32.gmra.mxu0 %v971
    %v1039 = vpop.f32.mrf.mxu0
    %v1040 = vadd.f32 0.0, %v1039
    %v1041 = vpop.f32.mrf.mxu0
    %1042 = vdwg.mxu0
    %v1044 = vrot.slane %v1040, 4
    %v1046 = vadd.f32 %v718, %v1044
    %v1047 = vmax.f32 %v1046, 0.0
    %vm1048 = vcmask 258052
    %1049 = vst.msk [vmem:[#allocation13] sm:$0x10] %vm1048, %v1047
    %v1051 = vrot.slane %v1047, 4
    %v1052 = vsel %vm726, %v1051, 0
    %1054 = vmatprep.subr.mxu0 0.0
    %1055 = vmatpush1.msra.mxu0 0.0
    %1056 = vmatprep.subr.mxu0 0.0
    %1057 = vmatpush1.msra.mxu0 0.0
    %1058 = vmatprep.subr.mxu0 0.0
    %1059 = vmatpush1.msra.mxu0 0.0
    %1060 = vmatprep.subr.mxu0 0.0
    %1061 = vmatpush1.msra.mxu0 0.0
    %1062 = vmatprep.subr.mxu0 0.0
    %1063 = vmatpush1.msra.mxu0 0.0
    %1064 = vmatprep.subr.mxu0 0.0
    %1065 = vmatpush1.msra.mxu0 0.0
    %1066 = vmatprep.subr.mxu0 0.0
    %1067 = vmatpush1.msra.mxu0 0.0
    %1068 = vmatprep.subr.mxu0 0.0
    %1069 = vmatpush1.msra.mxu0 0.0
    %1070 = vmatprep.subr.mxu0 0.0
    %1071 = vmatpush1.msra.mxu0 0.0
    %1072 = vmatprep.subr.mxu0 0.0
    %1073 = vmatpush1.msra.mxu0 0.0
    %1074 = vmatprep.subr.mxu0 0.0
    %1075 = vmatpush1.msra.mxu0 0.0
    %1076 = vmatprep.subr.mxu0 0.0
    %1077 = vmatpush1.msra.mxu0 0.0
    %1078 = vmatprep.subr.mxu0 0.0
    %1079 = vmatpush1.msra.mxu0 %v722
    %1080 = vmatprep.subr.mxu0 0.0
    %1081 = vmatpush1.msra.mxu0 %v721
    %1082 = vmatprep.subr.mxu0 0.0
    %1083 = vmatpush1.msra.mxu0 %v720
    %1084 = vmatprep.subr.mxu0 0.0
    %1085 = vmatpush1.msra.mxu0 %v719
    %1086 = vmatprep.subr.mxu0 0.0
    %1087 = vmatpush2.msra.mxu0 0.0
    %1088 = vmatprep.subr.mxu0 0.0
    %1089 = vmatpush2.msra.mxu0 0.0
    %1090 = vmatprep.subr.mxu0 0.0
    %1091 = vmatpush2.msra.mxu0 0.0
    %1092 = vmatprep.subr.mxu0 0.0
    %1093 = vmatpush2.msra.mxu0 0.0
    %1094 = vmatprep.subr.mxu0 0.0
    %1095 = vmatpush2.msra.mxu0 0.0
    %1096 = vmatprep.subr.mxu0 0.0
    %1097 = vmatpush2.msra.mxu0 0.0
    %1098 = vmatprep.subr.mxu0 0.0
    %1099 = vmatpush2.msra.mxu0 0.0
    %1100 = vmatprep.subr.mxu0 0.0
    %1101 = vmatpush2.msra.mxu0 0.0
    %1102 = vmatprep.subr.mxu0 0.0
    %1103 = vmatpush2.msra.mxu0 0.0
    %1104 = vmatprep.subr.mxu0 0.0
    %1105 = vmatpush2.msra.mxu0 0.0
    %1106 = vmatprep.subr.mxu0 0.0
    %1107 = vmatpush2.msra.mxu0 0.0
    %1108 = vmatprep.subr.mxu0 0.0
    %1109 = vmatpush2.msra.mxu0 0.0
    %1110 = vmatprep.subr.mxu0 0.0
    %1111 = vmatpush2.msra.mxu0 0.0
    %1112 = vmatprep.subr.mxu0 0.0
    %1113 = vmatpush2.msra.mxu0 0.0
    %1114 = vmatprep.subr.mxu0 0.0
    %1115 = vmatpush2.msra.mxu0 0.0
    %1116 = vmatprep.subr.mxu0 0.0
    %1117 = vmatpush2.msra.mxu0 0.0
    %1118 = vmatprep.mubr.f32.mxu0 0.0
    %1119 = vmatmul.mubr.f32.gmra.mxu0 %v1052
    %v1120 = vpop.f32.mrf.mxu0
    %v1121 = vadd.f32 0.0, %v1120
    %v1122 = vpop.f32.mrf.mxu0
    %1123 = vdwg.mxu0
    %v1125 = vrot.slane %v1121, 3
    %v1127 = vadd.f32 %v718, %v1125
    %v1128 = vmax.f32 %v1127, 0.0
    %vm1129 = vcmask 259077
    %1130 = vst.msk [vmem:[#allocation13] sm:$0x20] %vm1129, %v1128
    %v1132 = vrot.slane %v1128, 5
    %v1133 = vsel %vm726, %v1132, 0
    %1135 = vmatprep.subr.mxu0 0.0
    %1136 = vmatpush1.msra.mxu0 0.0
    %1137 = vmatprep.subr.mxu0 0.0
    %1138 = vmatpush1.msra.mxu0 0.0
    %1139 = vmatprep.subr.mxu0 0.0
    %1140 = vmatpush1.msra.mxu0 0.0
    %1141 = vmatprep.subr.mxu0 0.0
    %1142 = vmatpush1.msra.mxu0 0.0
    %1143 = vmatprep.subr.mxu0 0.0
    %1144 = vmatpush1.msra.mxu0 0.0
    %1145 = vmatprep.subr.mxu0 0.0
    %1146 = vmatpush1.msra.mxu0 0.0
    %1147 = vmatprep.subr.mxu0 0.0
    %1148 = vmatpush1.msra.mxu0 0.0
    %1149 = vmatprep.subr.mxu0 0.0
    %1150 = vmatpush1.msra.mxu0 0.0
    %1151 = vmatprep.subr.mxu0 0.0
    %1152 = vmatpush1.msra.mxu0 0.0
    %1153 = vmatprep.subr.mxu0 0.0
    %1154 = vmatpush1.msra.mxu0 0.0
    %1155 = vmatprep.subr.mxu0 0.0
    %1156 = vmatpush1.msra.mxu0 0.0
    %1157 = vmatprep.subr.mxu0 0.0
    %1158 = vmatpush1.msra.mxu0 0.0
    %1159 = vmatprep.subr.mxu0 0.0
    %1160 = vmatpush1.msra.mxu0 %v722
    %1161 = vmatprep.subr.mxu0 0.0
    %1162 = vmatpush1.msra.mxu0 %v721
    %1163 = vmatprep.subr.mxu0 0.0
    %1164 = vmatpush1.msra.mxu0 %v720
    %1165 = vmatprep.subr.mxu0 0.0
    %1166 = vmatpush1.msra.mxu0 %v719
    %1167 = vmatprep.subr.mxu0 0.0
    %1168 = vmatpush2.msra.mxu0 0.0
    %1169 = vmatprep.subr.mxu0 0.0
    %1170 = vmatpush2.msra.mxu0 0.0
    %1171 = vmatprep.subr.mxu0 0.0
    %1172 = vmatpush2.msra.mxu0 0.0
    %1173 = vmatprep.subr.mxu0 0.0
    %1174 = vmatpush2.msra.mxu0 0.0
    %1175 = vmatprep.subr.mxu0 0.0
    %1176 = vmatpush2.msra.mxu0 0.0
    %1177 = vmatprep.subr.mxu0 0.0
    %1178 = vmatpush2.msra.mxu0 0.0
    %1179 = vmatprep.subr.mxu0 0.0
    %1180 = vmatpush2.msra.mxu0 0.0
    %1181 = vmatprep.subr.mxu0 0.0
    %1182 = vmatpush2.msra.mxu0 0.0
    %1183 = vmatprep.subr.mxu0 0.0
    %1184 = vmatpush2.msra.mxu0 0.0
    %1185 = vmatprep.subr.mxu0 0.0
    %1186 = vmatpush2.msra.mxu0 0.0
    %1187 = vmatprep.subr.mxu0 0.0
    %1188 = vmatpush2.msra.mxu0 0.0
    %1189 = vmatprep.subr.mxu0 0.0
    %1190 = vmatpush2.msra.mxu0 0.0
    %1191 = vmatprep.subr.mxu0 0.0
    %1192 = vmatpush2.msra.mxu0 0.0
    %1193 = vmatprep.subr.mxu0 0.0
    %1194 = vmatpush2.msra.mxu0 0.0
    %1195 = vmatprep.subr.mxu0 0.0
    %1196 = vmatpush2.msra.mxu0 0.0
    %1197 = vmatprep.subr.mxu0 0.0
    %1198 = vmatpush2.msra.mxu0 0.0
    %1199 = vmatprep.mubr.f32.mxu0 0.0
    %1200 = vmatmul.mubr.f32.gmra.mxu0 %v1133
    %v1201 = vpop.f32.mrf.mxu0
    %v1202 = vadd.f32 0.0, %v1201
    %v1203 = vpop.f32.mrf.mxu0
    %1204 = vdwg.mxu0
    %v1206 = vrot.slane %v1202, 2
    %v1208 = vadd.f32 %v718, %v1206
    %v1209 = vmax.f32 %v1208, 0.0
    %vm1210 = vcmask 260102
    %1211 = vst.msk [vmem:[#allocation13] sm:$0x40] %vm1210, %v1209
    %v1213 = vrot.slane %v1209, 6
    %v1214 = vsel %vm726, %v1213, 0
    %1216 = vmatprep.subr.mxu0 0.0
    %1217 = vmatpush1.msra.mxu0 0.0
    %1218 = vmatprep.subr.mxu0 0.0
    %1219 = vmatpush1.msra.mxu0 0.0
    %1220 = vmatprep.subr.mxu0 0.0
    %1221 = vmatpush1.msra.mxu0 0.0
    %1222 = vmatprep.subr.mxu0 0.0
    %1223 = vmatpush1.msra.mxu0 0.0
    %1224 = vmatprep.subr.mxu0 0.0
    %1225 = vmatpush1.msra.mxu0 0.0
    %1226 = vmatprep.subr.mxu0 0.0
    %1227 = vmatpush1.msra.mxu0 0.0
    %1228 = vmatprep.subr.mxu0 0.0
    %1229 = vmatpush1.msra.mxu0 0.0
    %1230 = vmatprep.subr.mxu0 0.0
    %1231 = vmatpush1.msra.mxu0 0.0
    %1232 = vmatprep.subr.mxu0 0.0
    %1233 = vmatpush1.msra.mxu0 0.0
    %1234 = vmatprep.subr.mxu0 0.0
    %1235 = vmatpush1.msra.mxu0 0.0
    %1236 = vmatprep.subr.mxu0 0.0
    %1237 = vmatpush1.msra.mxu0 0.0
    %1238 = vmatprep.subr.mxu0 0.0
    %1239 = vmatpush1.msra.mxu0 0.0
    %1240 = vmatprep.subr.mxu0 0.0
    %1241 = vmatpush1.msra.mxu0 %v722
    %1242 = vmatprep.subr.mxu0 0.0
    %1243 = vmatpush1.msra.mxu0 %v721
    %1244 = vmatprep.subr.mxu0 0.0
    %1245 = vmatpush1.msra.mxu0 %v720
    %1246 = vmatprep.subr.mxu0 0.0
    %1247 = vmatpush1.msra.mxu0 %v719
    %1248 = vmatprep.subr.mxu0 0.0
    %1249 = vmatpush2.msra.mxu0 0.0
    %1250 = vmatprep.subr.mxu0 0.0
    %1251 = vmatpush2.msra.mxu0 0.0
    %1252 = vmatprep.subr.mxu0 0.0
    %1253 = vmatpush2.msra.mxu0 0.0
    %1254 = vmatprep.subr.mxu0 0.0
    %1255 = vmatpush2.msra.mxu0 0.0
    %1256 = vmatprep.subr.mxu0 0.0
    %1257 = vmatpush2.msra.mxu0 0.0
    %1258 = vmatprep.subr.mxu0 0.0
    %1259 = vmatpush2.msra.mxu0 0.0
    %1260 = vmatprep.subr.mxu0 0.0
    %1261 = vmatpush2.msra.mxu0 0.0
    %1262 = vmatprep.subr.mxu0 0.0
    %1263 = vmatpush2.msra.mxu0 0.0
    %1264 = vmatprep.subr.mxu0 0.0
    %1265 = vmatpush2.msra.mxu0 0.0
    %1266 = vmatprep.subr.mxu0 0.0
    %1267 = vmatpush2.msra.mxu0 0.0
    %1268 = vmatprep.subr.mxu0 0.0
    %1269 = vmatpush2.msra.mxu0 0.0
    %1270 = vmatprep.subr.mxu0 0.0
    %1271 = vmatpush2.msra.mxu0 0.0
    %1272 = vmatprep.subr.mxu0 0.0
    %1273 = vmatpush2.msra.mxu0 0.0
    %1274 = vmatprep.subr.mxu0 0.0
    %1275 = vmatpush2.msra.mxu0 0.0
    %1276 = vmatprep.subr.mxu0 0.0
    %1277 = vmatpush2.msra.mxu0 0.0
    %1278 = vmatprep.subr.mxu0 0.0
    %1279 = vmatpush2.msra.mxu0 0.0
    %1280 = vmatprep.mubr.f32.mxu0 0.0
    %1281 = vmatmul.mubr.f32.gmra.mxu0 %v1214
    %v1282 = vpop.f32.mrf.mxu0
    %v1283 = vadd.f32 0.0, %v1282
    %v1284 = vpop.f32.mrf.mxu0
    %1285 = vdwg.mxu0
    %v1287 = vrot.slane %v1283, 1
    %v1289 = vadd.f32 %v718, %v1287
    %v1290 = vmax.f32 %v1289, 0.0
    %vm1291 = vcmask 261127
    %1292 = vst.msk [vmem:[#allocation13] sm:$0x80] %vm1291, %v1290
    %1293 = vst.msk [vmem:[#allocation14 - $0x7] sm:$0x80] %vm1291, %v1290
    // Predicated region
    $region82: #{online_srnn_gln_forward.1} parent=1 // pred_check
      _
    $region83: #{online_srnn_gln_forward.1} parent=1 // pred_check_branch
      %1295 = sbr.rel (0) target = $region85
    $region84: #{online_srnn_gln_forward.1} parent=1 // pred_region
      %s1297 = ssub.s32 128, 128
      %1298 = vsyncadd [#allocation4], %s1297
      %s1300 = sshll.u32 [#allocation13], 4
      %s1301 = int_to_ptr.vmem [resolvable:$true] %s1300
      %1303 = dma.vmem_to_hbm [thread:$0]  %s1301, 128, %s14, [#allocation4]
    $region85: #{online_srnn_gln_forward.1} parent=1 // pred_fallthru
      _
    // Predicated region
    $region86: #{online_srnn_gln_forward.1} parent=1 // pred_check
      _
    $region87: #{online_srnn_gln_forward.1} parent=1 // pred_check_branch
      %1305 = sbr.rel (0) target = $region89
    $region88: #{online_srnn_gln_forward.1} parent=1 // pred_region
      %s1307 = ssub.s32 16, 16
      %1308 = vsyncadd [#allocation15], %s1307
      %s1310 = sshll.u32 [#allocation14], 4
      %s1311 = int_to_ptr.vmem [resolvable:$true] %s1310
      %1313 = dma.vmem_to_hbm [thread:$0]  %s1311, 16, %s15, [#allocation15]
    $region89: #{online_srnn_gln_forward.1} parent=1 // pred_fallthru
      _
    // Predicated region
    $region90: #{online_srnn_gln_forward.1} parent=1 // pred_check
      _
    $region91: #{online_srnn_gln_forward.1} parent=1 // pred_check_branch
      %1315 = sbr.rel (0) target = $region93
    $region92: #{online_srnn_gln_forward.1} parent=1 // pred_region
      %1316 = dma.done [#allocation4], 128
    $region93: #{online_srnn_gln_forward.1} parent=1 // pred_fallthru
      _
    // Predicated region
    $region94: #{online_srnn_gln_forward.1} parent=1 // pred_check
      _
    $region95: #{online_srnn_gln_forward.1} parent=1 // pred_check_branch
      %1318 = sbr.rel (0) target = $region97
    $region96: #{online_srnn_gln_forward.1} parent=1 // pred_region
      %1319 = dma.done [#allocation15], 16
    $region97: #{online_srnn_gln_forward.1} parent=1 // pred_fallthru
      _
    %1320 = vsyncpa [#allocation3], 1
    %1321 = vsyncpa [#allocation6], 1
    %1322 = vsyncpa [#allocation9], 1
    %1323 = vsyncpa [#allocation12], 1
    %1324 = vsyncpa [#allocation4], 1
    %1325 = vsyncpa [#allocation15], 1

</llo_original>
